<compile_context>
chip_gen: v7x
topology: tpu7x:2x2x1
jax: 0.10.0
libtpu: 0.0.40
codegen_flags: <defaults>
</compile_context>

<pallas_src>
import math

import jax
import jax.numpy as jnp
from jax.experimental import pallas as pl
from jax.experimental.pallas import tpu as pltpu

PAD_IDX = 0


def _layer_norm(h, gamma, beta, eps=1e-5):
    # nn.LayerNorm over last dim (biased variance, eps=1e-5), all in f32
    mu = jnp.mean(h, axis=-1, keepdims=True)
    var = jnp.mean((h - mu) ** 2, axis=-1, keepdims=True)
    return (h - mu) * jax.lax.rsqrt(var + eps) * gamma + beta


def make_encoder_call(batch, seq, emd, head, q_k, v_sz, f_sz, nblocks,
                      batch_tile=1):
    """One pallas_call that runs ALL encoder blocks; batch tiles x layers grid."""
    assert batch % batch_tile == 0
    nbt = batch // batch_tile          # number of batch tiles ("parallel" axis)
    tb = batch_tile
    rows = tb * seq                    # activation rows per batch tile
    hdk = head * q_k
    hdv = head * v_sz
    nqkv = 2 * hdk + hdv               # fused QKV output width
    scale = 1.0 / math.sqrt(q_k)
    bf16 = jnp.bfloat16

    def kernel(mask_ref, x_ref, wqkv_ref, bqkv_ref, wz_ref,
               w1_ref, b1_ref, w2_ref, vece_ref, out_ref):
        layer = pl.program_id(1)

        # Layer 0 (of this batch tile): seed the resident carry (= out block)
        # with the embedded input.  out block index is constant across the
        # layer axis, so it stays in VMEM and is written back only at the end.
        @pl.when(layer == 0)
        def _():
            out_ref[...] = x_ref[...]

        x = out_ref[...]                       # (rows, E) f32 carry
        x16 = x.astype(bf16)

        # Per-layer weight views: weights are fully VMEM-resident stacked
        # slabs; select this layer's slice with a dynamic first-axis index.
        wqkv = wqkv_ref[layer]                 # (E, Nqkv)   bf16
        bqkv = bqkv_ref[layer]                 # (1, Nqkv)   f32
        wz = wz_ref[layer]                     # (H*Dv, E)   bf16
        w1 = w1_ref[layer]                     # (E, F)      bf16
        b1 = b1_ref[layer]                     # (1, F)      f32
        w2 = w2_ref[layer]                     # (F, E)      bf16
        vece = vece_ref[layer]                 # (6, E)      f32
        bz, g1, be1, b2, g2, be2 = (vece[i:i + 1] for i in range(6))

        # ---- multi-head self-attention -------------------------------------
        # One fused QKV projection (single wide MXU matmul + one bias add).
        qkv = jnp.dot(x16, wqkv, preferred_element_type=jnp.float32) + bqkv

        # Pad mask: additive -1e9 bias, broadcast ONCE per layer.
        mask_b = jnp.broadcast_to(mask_ref[...], (tb, seq, seq))

        ctxs = []
        for h in range(head):                  # small static head count
            q = qkv[:, h * q_k:(h + 1) * q_k].reshape(tb, seq, q_k).astype(bf16)
            k = qkv[:, hdk + h * q_k: hdk + (h + 1) * q_k] \
                .reshape(tb, seq, q_k).astype(bf16)
            v = qkv[:, 2 * hdk + h * v_sz: 2 * hdk + (h + 1) * v_sz] \
                .reshape(tb, seq, v_sz).astype(bf16)
            s = jnp.einsum('bqd,bkd->bqk', q, k,
                           preferred_element_type=jnp.float32) * scale + mask_b
            m = jnp.max(s, axis=-1, keepdims=True)
            e = jnp.exp(s - m)
            # approx reciprocal runs on the EUP slot; set approx=False for
            # bit-tighter agreement with the PyTorch reference.
            p = e * pl.reciprocal(jnp.sum(e, axis=-1, keepdims=True), approx=True)
            ctx = jnp.einsum('bqk,bkd->bqd', p.astype(bf16), v,
                             preferred_element_type=jnp.float32)
            ctxs.append(ctx.reshape(rows, v_sz))

        # concat(heads) @ Wz as a single matmul
        zc = jnp.concatenate(ctxs, axis=-1)    # (rows, H*Dv)
        z = jnp.dot(zc.astype(bf16), wz, preferred_element_type=jnp.float32) + bz

        # add & norm
        y1 = _layer_norm(z + x, g1, be1)

        # ---- feed-forward (Linear -> ReLU -> Linear) + add & norm ----------
        f = jnp.dot(y1.astype(bf16), w1, preferred_element_type=jnp.float32) + b1
        f = jnp.maximum(f, 0.0)
        f = jnp.dot(f.astype(bf16), w2, preferred_element_type=jnp.float32) + b2
        y2 = _layer_norm(f + y1, g2, be2)

        out_ref[...] = y2                      # carry to the next layer (VMEM)

    def resident(shape):
        # Full-array block with a CONSTANT index map: DMA'd once, VMEM-resident.
        nd = len(shape)
        return pl.BlockSpec(shape, lambda b, l, _n=nd: (0,) * _n)

    in_specs = [
        pl.BlockSpec((tb, 1, seq), lambda b, l: (b, 0, 0)),    # additive pad mask
        pl.BlockSpec((rows, emd), lambda b, l: (b, 0)),        # embedded input
        resident((nblocks, emd, nqkv)),                        # Wq|Wk|Wv (bf16)
        resident((nblocks, 1, nqkv)),                          # bq|bk|bv (f32)
        resident((nblocks, hdv, emd)),                         # Wz (bf16)
        resident((nblocks, emd, f_sz)),                        # W1 (bf16)
        resident((nblocks, 1, f_sz)),                          # b1 (f32)
        resident((nblocks, f_sz, emd)),                        # W2 (bf16)
        resident((nblocks, 6, emd)),                           # bz,g1,b1n,b2,g2,b2n
    ]
    out_spec = pl.BlockSpec((rows, emd), lambda b, l: (b, 0))

    return pl.pallas_call(
        kernel,
        out_shape=jax.ShapeDtypeStruct((batch * seq, emd), jnp.float32),
        grid_spec=pltpu.PrefetchScalarGridSpec(
            num_scalar_prefetch=0,
            grid=(nbt, nblocks),
            in_specs=in_specs,
            out_specs=out_spec,
        ),
        # batch tiles are independent -> parallel (v7x 2 TCs); layer axis is a
        # sequential carry -> arbitrary.  VMEM use here is ~2 MB, well under
        # the default scoped limit on every generation, so no vmem_limit_bytes.
        compiler_params=pltpu.CompilerParams(
            dimension_semantics=("parallel", "arbitrary")),
    )


def init_params(key, vocab, emd, head, q_k, v_sz, f_sz, nblocks, seq_max_len):
    """Deterministic synthetic parameter init (shapes follow the nn.Module)."""
    keys = jax.random.split(key, 1 + nblocks)
    emb_table = jax.random.normal(keys[0], (vocab, emd), jnp.float32) * 0.1

    def lin(k, din, dout):
        kw, kb = jax.random.split(k)
        w = jax.random.normal(kw, (din, dout), jnp.float32) * (1.0 / math.sqrt(din))
        b = jax.random.normal(kb, (1, dout), jnp.float32) * 0.01
        return w, b

    blocks = []
    for i in range(nblocks):
        ks = jax.random.split(keys[1 + i], 6)
        wq, bq = lin(ks[0], emd, head * q_k)
        wk, bk = lin(ks[1], emd, head * q_k)
        wv, bv = lin(ks[2], emd, head * v_sz)
        wz, bz = lin(ks[3], head * v_sz, emd)
        w1, b1 = lin(ks[4], emd, f_sz)
        w2, b2 = lin(ks[5], f_sz, emd)
        blocks.append(dict(
            wq=wq, bq=bq, wk=wk, bk=bk, wv=wv, bv=bv, wz=wz, bz=bz,
            g1=jnp.ones((1, emd), jnp.float32), be1=jnp.zeros((1, emd), jnp.float32),
            w1=w1, b1=b1, w2=w2, b2=b2,
            g2=jnp.ones((1, emd), jnp.float32), be2=jnp.zeros((1, emd), jnp.float32)))

    # sinusoidal positional encoding (same formula as EmbeddingWithPosition)
    pos = jnp.arange(seq_max_len, dtype=jnp.float32)[:, None]
    div = jnp.exp(-jnp.arange(0, emd, 2, dtype=jnp.float32) * math.log(10000.0) / emd)
    pe = jnp.zeros((seq_max_len, emd), jnp.float32)
    pe = pe.at[:, 0::2].set(jnp.sin(pos * div))
    pe = pe.at[:, 1::2].set(jnp.cos(pos * div))
    return emb_table, pe, blocks


def pack_block_params(blocks):
    """Stack per-layer params on a leading layer axis and fuse them into a few
    wide slabs.  Matmul weights are cast to bf16 (MXU-native on v6e/v7x, halves
    weight bytes); biases / LayerNorm params stay f32 so vector math stays f32.
    Column layout is unchanged, so the math is identical to the fused weights."""
    def st(name):
        return jnp.stack([b[name] for b in blocks], axis=0)

    wqkv = jnp.concatenate([st('wq'), st('wk'), st('wv')], axis=-1).astype(jnp.bfloat16)
    bqkv = jnp.concatenate([st('bq'), st('bk'), st('bv')], axis=-1)        # (L,1,Nqkv)
    wz = st('wz').astype(jnp.bfloat16)                                     # (L,H*Dv,E)
    w1 = st('w1').astype(jnp.bfloat16)                                     # (L,E,F)
    b1 = st('b1')                                                          # (L,1,F)
    w2 = st('w2').astype(jnp.bfloat16)                                     # (L,F,E)
    vece = jnp.concatenate([st('bz'), st('g1'), st('be1'),
                            st('b2'), st('g2'), st('be2')], axis=1)        # (L,6,E)
    return (wqkv, bqkv, wz, w1, b1, w2, vece)


def encoder_forward(tokens, emb_table, pe, packed, call):
    B, S = tokens.shape
    emd = emb_table.shape[1]
    # masked_fill(mask, -1e9) -> equivalent additive bias (-1e9 at PAD keys)
    mask_bias = jnp.where(tokens == PAD_IDX, -1e9, 0.0).astype(jnp.float32)[:, None, :]
    # TODO(synk): the embedding gather is a data-dependent lookup; it stays in
    # plain JAX (XLA gather) and only the dense (B*S, E) slab enters the kernel.
    x = jnp.take(emb_table, tokens, axis=0) + pe[None, :S, :]
    out = call(mask_bias, x.reshape(B * S, emd), *packed)
    return out.reshape(B, S, emd)


if __name__ == "__main__":
    # Small but lane-dense demo shapes (E, F, H*Dv, Nqkv all multiples of 128).
    B, S = 2, 8
    VOCAB, EMD, HEAD, QK, VS, FS = 100, 128, 4, 32, 32, 256
    NBLOCKS, SEQ_MAX = 5, 64

    key = jax.random.PRNGKey(0)
    k_tok, k_par = jax.random.split(key)
    tokens = jax.random.randint(k_tok, (B, S), 0, VOCAB, dtype=jnp.int32)
    tokens = tokens.at[:, -2:].set(PAD_IDX)   # exercise the padding mask

    emb_table, pe, blocks = init_params(
        k_par, VOCAB, EMD, HEAD, QK, VS, FS, NBLOCKS, SEQ_MAX)
    packed = pack_block_params(blocks)
    call = make_encoder_call(B, S, EMD, HEAD, QK, VS, FS, NBLOCKS, batch_tile=1)

    fwd = jax.jit(
        lambda toks, emb, pos, *params: encoder_forward(toks, emb, pos, params, call))
    out = jax.block_until_ready(fwd(tokens, emb_table, pe, *packed))

    assert out.shape == (B, S, EMD) and out.dtype == jnp.float32
    assert bool(jnp.all(jnp.isfinite(out)))
    print("KERNEL_OK")
</pallas_src>

<mosaic_0001>
module attributes {stable_mosaic.version = 11 : i64} {
  func.func @kernel(%arg0: i32, %arg1: i32, %arg2: memref<1x1x8xf32, #tpu.memory_space<vmem>>, %arg3: memref<8x128xf32, #tpu.memory_space<vmem>>, %arg4: memref<5x128x384xbf16, #tpu.memory_space<vmem>>, %arg5: memref<5x1x384xf32, #tpu.memory_space<vmem>>, %arg6: memref<5x128x128xbf16, #tpu.memory_space<vmem>>, %arg7: memref<5x128x256xbf16, #tpu.memory_space<vmem>>, %arg8: memref<5x1x256xf32, #tpu.memory_space<vmem>>, %arg9: memref<5x256x128xbf16, #tpu.memory_space<vmem>>, %arg10: memref<5x6x128xf32, #tpu.memory_space<vmem>>, %arg11: memref<8x128xf32, #tpu.memory_space<vmem>>) attributes {dimension_semantics = [#tpu.dimension_semantics<parallel>, #tpu.dimension_semantics<arbitrary>], iteration_bounds = array<i64: 2, 5>, scalar_prefetch = 0 : i64, scratch_operands = 0 : i64, tpu.core_type = #tpu.core_type<tc>, window_params = [{transform_indices = @transform_0, window_bounds = array<i64: 1, 1, 8>}, {transform_indices = @transform_1, window_bounds = array<i64: 8, 128>}, {pipeline_mode = #tpu.pipeline_mode<synchronous>, transform_indices = @transform_2, window_bounds = array<i64: 5, 128, 384>}, {pipeline_mode = #tpu.pipeline_mode<synchronous>, transform_indices = @transform_3, window_bounds = array<i64: 5, 1, 384>}, {pipeline_mode = #tpu.pipeline_mode<synchronous>, transform_indices = @transform_4, window_bounds = array<i64: 5, 128, 128>}, {pipeline_mode = #tpu.pipeline_mode<synchronous>, transform_indices = @transform_5, window_bounds = array<i64: 5, 128, 256>}, {pipeline_mode = #tpu.pipeline_mode<synchronous>, transform_indices = @transform_6, window_bounds = array<i64: 5, 1, 256>}, {pipeline_mode = #tpu.pipeline_mode<synchronous>, transform_indices = @transform_7, window_bounds = array<i64: 5, 256, 128>}, {pipeline_mode = #tpu.pipeline_mode<synchronous>, transform_indices = @transform_8, window_bounds = array<i64: 5, 6, 128>}, {transform_indices = @transform_9, window_bounds = array<i64: 8, 128>}]} {
    %c0_i32 = arith.constant 0 : i32
    %0 = arith.cmpi eq, %arg1, %c0_i32 : i32
    %1 = arith.extui %0 : i1 to i32
    %c0_i32_0 = arith.constant 0 : i32
    %2 = arith.cmpi ne, %1, %c0_i32_0 : i32
    scf.if %2 {
      %c0_55 = arith.constant 0 : index
      %c0_56 = arith.constant 0 : index
      %204 = vector.load %arg3[%c0_55, %c0_56] : memref<8x128xf32, #tpu.memory_space<vmem>>, vector<8x128xf32>
      %c0_57 = arith.constant 0 : index
      %c0_58 = arith.constant 0 : index
      %205 = vector.load %arg11[%c0_57, %c0_58] : memref<8x128xf32, #tpu.memory_space<vmem>>, vector<8x128xf32>
      tpu.vector_store %arg11[%c0_57, %c0_58], %204 {strides = array<i32>} : memref<8x128xf32, #tpu.memory_space<vmem>>, vector<8x128xf32>,
    } else {
    }
    %c0 = arith.constant 0 : index
    %c0_1 = arith.constant 0 : index
    %3 = vector.load %arg11[%c0, %c0_1] : memref<8x128xf32, #tpu.memory_space<vmem>>, vector<8x128xf32>
    %4 = arith.truncf %3 : vector<8x128xf32> to vector<8x128xbf16>
    %5 = arith.index_cast %arg1 : i32 to index
    %c0_2 = arith.constant 0 : index
    %c0_3 = arith.constant 0 : index
    %6 = vector.load %arg4[%5, %c0_2, %c0_3] : memref<5x128x384xbf16, #tpu.memory_space<vmem>>, vector<1x128x384xbf16>
    %7 = vector.shape_cast %6 : vector<1x128x384xbf16> to vector<128x384xbf16>
    %8 = arith.index_cast %arg1 : i32 to index
    %c0_4 = arith.constant 0 : index
    %c0_5 = arith.constant 0 : index
    %9 = vector.load %arg5[%8, %c0_4, %c0_5] : memref<5x1x384xf32, #tpu.memory_space<vmem>>, vector<1x1x384xf32>
    %10 = vector.shape_cast %9 : vector<1x1x384xf32> to vector<1x384xf32>
    %11 = arith.index_cast %arg1 : i32 to index
    %c0_6 = arith.constant 0 : index
    %c0_7 = arith.constant 0 : index
    %12 = vector.load %arg6[%11, %c0_6, %c0_7] : memref<5x128x128xbf16, #tpu.memory_space<vmem>>, vector<1x128x128xbf16>
    %13 = vector.shape_cast %12 : vector<1x128x128xbf16> to vector<128x128xbf16>
    %14 = arith.index_cast %arg1 : i32 to index
    %c0_8 = arith.constant 0 : index
    %c0_9 = arith.constant 0 : index
    %15 = vector.load %arg7[%14, %c0_8, %c0_9] : memref<5x128x256xbf16, #tpu.memory_space<vmem>>, vector<1x128x256xbf16>
    %16 = vector.shape_cast %15 : vector<1x128x256xbf16> to vector<128x256xbf16>
    %17 = arith.index_cast %arg1 : i32 to index
    %c0_10 = arith.constant 0 : index
    %c0_11 = arith.constant 0 : index
    %18 = vector.load %arg8[%17, %c0_10, %c0_11] : memref<5x1x256xf32, #tpu.memory_space<vmem>>, vector<1x1x256xf32>
    %19 = vector.shape_cast %18 : vector<1x1x256xf32> to vector<1x256xf32>
    %20 = arith.index_cast %arg1 : i32 to index
    %c0_12 = arith.constant 0 : index
    %c0_13 = arith.constant 0 : index
    %21 = vector.load %arg9[%20, %c0_12, %c0_13] : memref<5x256x128xbf16, #tpu.memory_space<vmem>>, vector<1x256x128xbf16>
    %22 = vector.shape_cast %21 : vector<1x256x128xbf16> to vector<256x128xbf16>
    %23 = arith.index_cast %arg1 : i32 to index
    %c0_14 = arith.constant 0 : index
    %c0_15 = arith.constant 0 : index
    %24 = vector.load %arg10[%23, %c0_14, %c0_15] : memref<5x6x128xf32, #tpu.memory_space<vmem>>, vector<1x6x128xf32>
    %25 = vector.shape_cast %24 : vector<1x6x128xf32> to vector<6x128xf32>
    %26 = vector.extract_strided_slice %25 {offsets = [0, 0], sizes = [1, 128], strides = [1, 1]} : vector<6x128xf32> to vector<1x128xf32>
    %27 = vector.extract_strided_slice %25 {offsets = [1, 0], sizes = [1, 128], strides = [1, 1]} : vector<6x128xf32> to vector<1x128xf32>
    %28 = vector.extract_strided_slice %25 {offsets = [2, 0], sizes = [1, 128], strides = [1, 1]} : vector<6x128xf32> to vector<1x128xf32>
    %29 = vector.extract_strided_slice %25 {offsets = [3, 0], sizes = [1, 128], strides = [1, 1]} : vector<6x128xf32> to vector<1x128xf32>
    %30 = vector.extract_strided_slice %25 {offsets = [4, 0], sizes = [1, 128], strides = [1, 1]} : vector<6x128xf32> to vector<1x128xf32>
    %31 = vector.extract_strided_slice %25 {offsets = [5, 0], sizes = [1, 128], strides = [1, 1]} : vector<6x128xf32> to vector<1x128xf32>
    %cst = arith.constant dense<0.000000e+00> : vector<8x384xf32>
    %32 = tpu.matmul %4, %7, %cst {dimension_numbers = #tpu.dot_dimension_numbers<[1], [0], [0], [1], [0, 0, 1, 1], [], []>} : vector<8x128xbf16>, vector<128x384xbf16>, vector<8x384xf32> -> vector<8x384xf32>
    %33 = vector.broadcast %10 : vector<1x384xf32> to vector<8x384xf32>
    %34 = arith.addf %32, %33 : vector<8x384xf32>
    %c0_16 = arith.constant 0 : index
    %c0_17 = arith.constant 0 : index
    %c0_18 = arith.constant 0 : index
    %35 = vector.load %arg2[%c0_16, %c0_17, %c0_18] : memref<1x1x8xf32, #tpu.memory_space<vmem>>, vector<1x1x8xf32>
    %36 = vector.shape_cast %35 : vector<1x1x8xf32> to vector<1x1x8xf32>
    %37 = vector.broadcast %36 : vector<1x1x8xf32> to vector<1x8x8xf32>
    %38 = vector.extract_strided_slice %34 {offsets = [0, 0], sizes = [8, 32], strides = [1, 1]} : vector<8x384xf32> to vector<8x32xf32>
    %39 = vector.shape_cast %38 : vector<8x32xf32> to vector<1x8x32xf32>
    %40 = arith.truncf %39 : vector<1x8x32xf32> to vector<1x8x32xbf16>
    %41 = vector.extract_strided_slice %34 {offsets = [0, 128], sizes = [8, 32], strides = [1, 1]} : vector<8x384xf32> to vector<8x32xf32>
    %42 = vector.shape_cast %41 : vector<8x32xf32> to vector<1x8x32xf32>
    %43 = arith.truncf %42 : vector<1x8x32xf32> to vector<1x8x32xbf16>
    %44 = vector.extract_strided_slice %34 {offsets = [0, 256], sizes = [8, 32], strides = [1, 1]} : vector<8x384xf32> to vector<8x32xf32>
    %45 = vector.shape_cast %44 : vector<8x32xf32> to vector<1x8x32xf32>
    %46 = arith.truncf %45 : vector<1x8x32xf32> to vector<1x8x32xbf16>
    "tpu.trace_start"() <{level = 10 : i32, message = "bqd,bkd->bqk"}> : () -> ()
    %cst_19 = arith.constant dense<0.000000e+00> : vector<1x8x8xf32>
    %47 = tpu.matmul %40, %43, %cst_19 {dimension_numbers = #tpu.dot_dimension_numbers<[2], [2], [1], [1], [0, 0, 0, 1, 1, 1], [0], [0]>} : vector<1x8x32xbf16>, vector<1x8x32xbf16>, vector<1x8x8xf32> -> vector<1x8x8xf32>
    "tpu.trace_stop"() : () -> ()
    %cst_20 = arith.constant 0.176776692 : f32
    %48 = vector.broadcast %cst_20 : f32 to vector<1x8x8xf32>
    %49 = arith.mulf %47, %48 : vector<1x8x8xf32>
    %50 = arith.addf %49, %37 : vector<1x8x8xf32>
    %cst_21 = arith.constant dense<0xFF800000> : vector<1x8xf32>
    %51 = vector.multi_reduction <maximumf>, %50, %cst_21 [2] : vector<1x8x8xf32> to vector<1x8xf32>
    %52 = vector.shape_cast %51 : vector<1x8xf32> to vector<1x8x1xf32>
    %53 = vector.broadcast %52 : vector<1x8x1xf32> to vector<1x8x8xf32>
    %54 = arith.subf %50, %53 : vector<1x8x8xf32>
    %55 = math.exp %54 : vector<1x8x8xf32>
    %cst_22 = arith.constant dense<0.000000e+00> : vector<1x8xf32>
    %56 = vector.multi_reduction <add>, %55, %cst_22 [2] : vector<1x8x8xf32> to vector<1x8xf32>
    %57 = vector.shape_cast %56 : vector<1x8xf32> to vector<1x8x1xf32>
    %58 = tpu.reciprocal %57 {approx = true} : vector<1x8x1xf32> -> vector<1x8x1xf32>
    %59 = vector.broadcast %58 : vector<1x8x1xf32> to vector<1x8x8xf32>
    %60 = arith.mulf %55, %59 : vector<1x8x8xf32>
    %61 = arith.truncf %60 : vector<1x8x8xf32> to vector<1x8x8xbf16>
    "tpu.trace_start"() <{level = 10 : i32, message = "bqk,bkd->bqd"}> : () -> ()
    %cst_23 = arith.constant dense<0.000000e+00> : vector<1x8x32xf32>
    %62 = tpu.matmul %61, %46, %cst_23 {dimension_numbers = #tpu.dot_dimension_numbers<[2], [1], [1], [2], [0, 0, 0, 1, 1, 2], [0], [0]>} : vector<1x8x8xbf16>, vector<1x8x32xbf16>, vector<1x8x32xf32> -> vector<1x8x32xf32>
    "tpu.trace_stop"() : () -> ()
    %63 = vector.shape_cast %62 : vector<1x8x32xf32> to vector<8x32xf32>
    %64 = vector.extract_strided_slice %34 {offsets = [0, 32], sizes = [8, 32], strides = [1, 1]} : vector<8x384xf32> to vector<8x32xf32>
    %65 = vector.shape_cast %64 : vector<8x32xf32> to vector<1x8x32xf32>
    %66 = arith.truncf %65 : vector<1x8x32xf32> to vector<1x8x32xbf16>
    %67 = vector.extract_strided_slice %34 {offsets = [0, 160], sizes = [8, 32], strides = [1, 1]} : vector<8x384xf32> to vector<8x32xf32>
    %68 = vector.shape_cast %67 : vector<8x32xf32> to vector<1x8x32xf32>
    %69 = arith.truncf %68 : vector<1x8x32xf32> to vector<1x8x32xbf16>
    %70 = vector.extract_strided_slice %34 {offsets = [0, 288], sizes = [8, 32], strides = [1, 1]} : vector<8x384xf32> to vector<8x32xf32>
    %71 = vector.shape_cast %70 : vector<8x32xf32> to vector<1x8x32xf32>
    %72 = arith.truncf %71 : vector<1x8x32xf32> to vector<1x8x32xbf16>
    "tpu.trace_start"() <{level = 10 : i32, message = "bqd,bkd->bqk"}> : () -> ()
    %cst_24 = arith.constant dense<0.000000e+00> : vector<1x8x8xf32>
    %73 = tpu.matmul %66, %69, %cst_24 {dimension_numbers = #tpu.dot_dimension_numbers<[2], [2], [1], [1], [0, 0, 0, 1, 1, 1], [0], [0]>} : vector<1x8x32xbf16>, vector<1x8x32xbf16>, vector<1x8x8xf32> -> vector<1x8x8xf32>
    "tpu.trace_stop"() : () -> ()
    %cst_25 = arith.constant 0.176776692 : f32
    %74 = vector.broadcast %cst_25 : f32 to vector<1x8x8xf32>
    %75 = arith.mulf %73, %74 : vector<1x8x8xf32>
    %76 = arith.addf %75, %37 : vector<1x8x8xf32>
    %cst_26 = arith.constant dense<0xFF800000> : vector<1x8xf32>
    %77 = vector.multi_reduction <maximumf>, %76, %cst_26 [2] : vector<1x8x8xf32> to vector<1x8xf32>
    %78 = vector.shape_cast %77 : vector<1x8xf32> to vector<1x8x1xf32>
    %79 = vector.broadcast %78 : vector<1x8x1xf32> to vector<1x8x8xf32>
    %80 = arith.subf %76, %79 : vector<1x8x8xf32>
    %81 = math.exp %80 : vector<1x8x8xf32>
    %cst_27 = arith.constant dense<0.000000e+00> : vector<1x8xf32>
    %82 = vector.multi_reduction <add>, %81, %cst_27 [2] : vector<1x8x8xf32> to vector<1x8xf32>
    %83 = vector.shape_cast %82 : vector<1x8xf32> to vector<1x8x1xf32>
    %84 = tpu.reciprocal %83 {approx = true} : vector<1x8x1xf32> -> vector<1x8x1xf32>
    %85 = vector.broadcast %84 : vector<1x8x1xf32> to vector<1x8x8xf32>
    %86 = arith.mulf %81, %85 : vector<1x8x8xf32>
    %87 = arith.truncf %86 : vector<1x8x8xf32> to vector<1x8x8xbf16>
    "tpu.trace_start"() <{level = 10 : i32, message = "bqk,bkd->bqd"}> : () -> ()
    %cst_28 = arith.constant dense<0.000000e+00> : vector<1x8x32xf32>
    %88 = tpu.matmul %87, %72, %cst_28 {dimension_numbers = #tpu.dot_dimension_numbers<[2], [1], [1], [2], [0, 0, 0, 1, 1, 2], [0], [0]>} : vector<1x8x8xbf16>, vector<1x8x32xbf16>, vector<1x8x32xf32> -> vector<1x8x32xf32>
    "tpu.trace_stop"() : () -> ()
    %89 = vector.shape_cast %88 : vector<1x8x32xf32> to vector<8x32xf32>
    %90 = vector.extract_strided_slice %34 {offsets = [0, 64], sizes = [8, 32], strides = [1, 1]} : vector<8x384xf32> to vector<8x32xf32>
    %91 = vector.shape_cast %90 : vector<8x32xf32> to vector<1x8x32xf32>
    %92 = arith.truncf %91 : vector<1x8x32xf32> to vector<1x8x32xbf16>
    %93 = vector.extract_strided_slice %34 {offsets = [0, 192], sizes = [8, 32], strides = [1, 1]} : vector<8x384xf32> to vector<8x32xf32>
    %94 = vector.shape_cast %93 : vector<8x32xf32> to vector<1x8x32xf32>
    %95 = arith.truncf %94 : vector<1x8x32xf32> to vector<1x8x32xbf16>
    %96 = vector.extract_strided_slice %34 {offsets = [0, 320], sizes = [8, 32], strides = [1, 1]} : vector<8x384xf32> to vector<8x32xf32>
    %97 = vector.shape_cast %96 : vector<8x32xf32> to vector<1x8x32xf32>
    %98 = arith.truncf %97 : vector<1x8x32xf32> to vector<1x8x32xbf16>
    "tpu.trace_start"() <{level = 10 : i32, message = "bqd,bkd->bqk"}> : () -> ()
    %cst_29 = arith.constant dense<0.000000e+00> : vector<1x8x8xf32>
    %99 = tpu.matmul %92, %95, %cst_29 {dimension_numbers = #tpu.dot_dimension_numbers<[2], [2], [1], [1], [0, 0, 0, 1, 1, 1], [0], [0]>} : vector<1x8x32xbf16>, vector<1x8x32xbf16>, vector<1x8x8xf32> -> vector<1x8x8xf32>
    "tpu.trace_stop"() : () -> ()
    %cst_30 = arith.constant 0.176776692 : f32
    %100 = vector.broadcast %cst_30 : f32 to vector<1x8x8xf32>
    %101 = arith.mulf %99, %100 : vector<1x8x8xf32>
    %102 = arith.addf %101, %37 : vector<1x8x8xf32>
    %cst_31 = arith.constant dense<0xFF800000> : vector<1x8xf32>
    %103 = vector.multi_reduction <maximumf>, %102, %cst_31 [2] : vector<1x8x8xf32> to vector<1x8xf32>
    %104 = vector.shape_cast %103 : vector<1x8xf32> to vector<1x8x1xf32>
    %105 = vector.broadcast %104 : vector<1x8x1xf32> to vector<1x8x8xf32>
    %106 = arith.subf %102, %105 : vector<1x8x8xf32>
    %107 = math.exp %106 : vector<1x8x8xf32>
    %cst_32 = arith.constant dense<0.000000e+00> : vector<1x8xf32>
    %108 = vector.multi_reduction <add>, %107, %cst_32 [2] : vector<1x8x8xf32> to vector<1x8xf32>
    %109 = vector.shape_cast %108 : vector<1x8xf32> to vector<1x8x1xf32>
    %110 = tpu.reciprocal %109 {approx = true} : vector<1x8x1xf32> -> vector<1x8x1xf32>
    %111 = vector.broadcast %110 : vector<1x8x1xf32> to vector<1x8x8xf32>
    %112 = arith.mulf %107, %111 : vector<1x8x8xf32>
    %113 = arith.truncf %112 : vector<1x8x8xf32> to vector<1x8x8xbf16>
    "tpu.trace_start"() <{level = 10 : i32, message = "bqk,bkd->bqd"}> : () -> ()
    %cst_33 = arith.constant dense<0.000000e+00> : vector<1x8x32xf32>
    %114 = tpu.matmul %113, %98, %cst_33 {dimension_numbers = #tpu.dot_dimension_numbers<[2], [1], [1], [2], [0, 0, 0, 1, 1, 2], [0], [0]>} : vector<1x8x8xbf16>, vector<1x8x32xbf16>, vector<1x8x32xf32> -> vector<1x8x32xf32>
    "tpu.trace_stop"() : () -> ()
    %115 = vector.shape_cast %114 : vector<1x8x32xf32> to vector<8x32xf32>
    %116 = vector.extract_strided_slice %34 {offsets = [0, 96], sizes = [8, 32], strides = [1, 1]} : vector<8x384xf32> to vector<8x32xf32>
    %117 = vector.shape_cast %116 : vector<8x32xf32> to vector<1x8x32xf32>
    %118 = arith.truncf %117 : vector<1x8x32xf32> to vector<1x8x32xbf16>
    %119 = vector.extract_strided_slice %34 {offsets = [0, 224], sizes = [8, 32], strides = [1, 1]} : vector<8x384xf32> to vector<8x32xf32>
    %120 = vector.shape_cast %119 : vector<8x32xf32> to vector<1x8x32xf32>
    %121 = arith.truncf %120 : vector<1x8x32xf32> to vector<1x8x32xbf16>
    %122 = vector.extract_strided_slice %34 {offsets = [0, 352], sizes = [8, 32], strides = [1, 1]} : vector<8x384xf32> to vector<8x32xf32>
    %123 = vector.shape_cast %122 : vector<8x32xf32> to vector<1x8x32xf32>
    %124 = arith.truncf %123 : vector<1x8x32xf32> to vector<1x8x32xbf16>
    "tpu.trace_start"() <{level = 10 : i32, message = "bqd,bkd->bqk"}> : () -> ()
    %cst_34 = arith.constant dense<0.000000e+00> : vector<1x8x8xf32>
    %125 = tpu.matmul %118, %121, %cst_34 {dimension_numbers = #tpu.dot_dimension_numbers<[2], [2], [1], [1], [0, 0, 0, 1, 1, 1], [0], [0]>} : vector<1x8x32xbf16>, vector<1x8x32xbf16>, vector<1x8x8xf32> -> vector<1x8x8xf32>
    "tpu.trace_stop"() : () -> ()
    %cst_35 = arith.constant 0.176776692 : f32
    %126 = vector.broadcast %cst_35 : f32 to vector<1x8x8xf32>
    %127 = arith.mulf %125, %126 : vector<1x8x8xf32>
    %128 = arith.addf %127, %37 : vector<1x8x8xf32>
    %cst_36 = arith.constant dense<0xFF800000> : vector<1x8xf32>
    %129 = vector.multi_reduction <maximumf>, %128, %cst_36 [2] : vector<1x8x8xf32> to vector<1x8xf32>
    %130 = vector.shape_cast %129 : vector<1x8xf32> to vector<1x8x1xf32>
    %131 = vector.broadcast %130 : vector<1x8x1xf32> to vector<1x8x8xf32>
    %132 = arith.subf %128, %131 : vector<1x8x8xf32>
    %133 = math.exp %132 : vector<1x8x8xf32>
    %cst_37 = arith.constant dense<0.000000e+00> : vector<1x8xf32>
    %134 = vector.multi_reduction <add>, %133, %cst_37 [2] : vector<1x8x8xf32> to vector<1x8xf32>
    %135 = vector.shape_cast %134 : vector<1x8xf32> to vector<1x8x1xf32>
    %136 = tpu.reciprocal %135 {approx = true} : vector<1x8x1xf32> -> vector<1x8x1xf32>
    %137 = vector.broadcast %136 : vector<1x8x1xf32> to vector<1x8x8xf32>
    %138 = arith.mulf %133, %137 : vector<1x8x8xf32>
    %139 = arith.truncf %138 : vector<1x8x8xf32> to vector<1x8x8xbf16>
    "tpu.trace_start"() <{level = 10 : i32, message = "bqk,bkd->bqd"}> : () -> ()
    %cst_38 = arith.constant dense<0.000000e+00> : vector<1x8x32xf32>
    %140 = tpu.matmul %139, %124, %cst_38 {dimension_numbers = #tpu.dot_dimension_numbers<[2], [1], [1], [2], [0, 0, 0, 1, 1, 2], [0], [0]>} : vector<1x8x8xbf16>, vector<1x8x32xbf16>, vector<1x8x32xf32> -> vector<1x8x32xf32>
    "tpu.trace_stop"() : () -> ()
    %141 = vector.shape_cast %140 : vector<1x8x32xf32> to vector<8x32xf32>
    %142 = tpu.concatenate %63, %89, %115, %141 in 1 : vector<8x32xf32>, vector<8x32xf32>, vector<8x32xf32>, vector<8x32xf32> -> vector<8x128xf32>
    %143 = arith.truncf %142 : vector<8x128xf32> to vector<8x128xbf16>
    %cst_39 = arith.constant dense<0.000000e+00> : vector<8x128xf32>
    %144 = tpu.matmul %143, %13, %cst_39 {dimension_numbers = #tpu.dot_dimension_numbers<[1], [0], [0], [1], [0, 0, 1, 1], [], []>} : vector<8x128xbf16>, vector<128x128xbf16>, vector<8x128xf32> -> vector<8x128xf32>
    %145 = vector.broadcast %26 : vector<1x128xf32> to vector<8x128xf32>
    %146 = arith.addf %144, %145 : vector<8x128xf32>
    %147 = arith.addf %146, %3 : vector<8x128xf32>
    %cst_40 = arith.constant dense<0.000000e+00> : vector<8xf32>
    %148 = vector.multi_reduction <add>, %147, %cst_40 [1] : vector<8x128xf32> to vector<8xf32>
    %149 = vector.shape_cast %148 : vector<8xf32> to vector<8x1xf32>
    %cst_41 = arith.constant 1.280000e+02 : f32
    %150 = vector.broadcast %cst_41 : f32 to vector<8x1xf32>
    %151 = arith.divf %149, %150 : vector<8x1xf32>
    %152 = vector.broadcast %151 : vector<8x1xf32> to vector<8x128xf32>
    %153 = arith.subf %147, %152 : vector<8x128xf32>
    %154 = arith.mulf %153, %153 : vector<8x128xf32>
    %cst_42 = arith.constant dense<0.000000e+00> : vector<8xf32>
    %155 = vector.multi_reduction <add>, %154, %cst_42 [1] : vector<8x128xf32> to vector<8xf32>
    %156 = vector.shape_cast %155 : vector<8xf32> to vector<8x1xf32>
    %cst_43 = arith.constant 1.280000e+02 : f32
    %157 = vector.broadcast %cst_43 : f32 to vector<8x1xf32>
    %158 = arith.divf %156, %157 : vector<8x1xf32>
    %159 = vector.broadcast %151 : vector<8x1xf32> to vector<8x128xf32>
    %160 = arith.subf %147, %159 : vector<8x128xf32>
    %cst_44 = arith.constant 9.99999974E-6 : f32
    %161 = vector.broadcast %cst_44 : f32 to vector<8x1xf32>
    %162 = arith.addf %158, %161 : vector<8x1xf32>
    %163 = math.rsqrt %162 : vector<8x1xf32>
    %164 = vector.broadcast %163 : vector<8x1xf32> to vector<8x128xf32>
    %165 = arith.mulf %160, %164 : vector<8x128xf32>
    %166 = vector.broadcast %27 : vector<1x128xf32> to vector<8x128xf32>
    %167 = arith.mulf %165, %166 : vector<8x128xf32>
    %168 = vector.broadcast %28 : vector<1x128xf32> to vector<8x128xf32>
    %169 = arith.addf %167, %168 : vector<8x128xf32>
    %170 = arith.truncf %169 : vector<8x128xf32> to vector<8x128xbf16>
    %cst_45 = arith.constant dense<0.000000e+00> : vector<8x256xf32>
    %171 = tpu.matmul %170, %16, %cst_45 {dimension_numbers = #tpu.dot_dimension_numbers<[1], [0], [0], [1], [0, 0, 1, 1], [], []>} : vector<8x128xbf16>, vector<128x256xbf16>, vector<8x256xf32> -> vector<8x256xf32>
    %172 = vector.broadcast %19 : vector<1x256xf32> to vector<8x256xf32>
    %173 = arith.addf %171, %172 : vector<8x256xf32>
    %cst_46 = arith.constant 0.000000e+00 : f32
    %174 = vector.broadcast %cst_46 : f32 to vector<8x256xf32>
    %175 = arith.maximumf %173, %174 : vector<8x256xf32>
    %176 = arith.truncf %175 : vector<8x256xf32> to vector<8x256xbf16>
    %cst_47 = arith.constant dense<0.000000e+00> : vector<8x128xf32>
    %177 = tpu.matmul %176, %22, %cst_47 {dimension_numbers = #tpu.dot_dimension_numbers<[1], [0], [0], [1], [0, 0, 1, 1], [], []>} : vector<8x256xbf16>, vector<256x128xbf16>, vector<8x128xf32> -> vector<8x128xf32>
    %178 = vector.broadcast %29 : vector<1x128xf32> to vector<8x128xf32>
    %179 = arith.addf %177, %178 : vector<8x128xf32>
    %180 = arith.addf %179, %169 : vector<8x128xf32>
    %cst_48 = arith.constant dense<0.000000e+00> : vector<8xf32>
    %181 = vector.multi_reduction <add>, %180, %cst_48 [1] : vector<8x128xf32> to vector<8xf32>
    %182 = vector.shape_cast %181 : vector<8xf32> to vector<8x1xf32>
    %cst_49 = arith.constant 1.280000e+02 : f32
    %183 = vector.broadcast %cst_49 : f32 to vector<8x1xf32>
    %184 = arith.divf %182, %183 : vector<8x1xf32>
    %185 = vector.broadcast %184 : vector<8x1xf32> to vector<8x128xf32>
    %186 = arith.subf %180, %185 : vector<8x128xf32>
    %187 = arith.mulf %186, %186 : vector<8x128xf32>
    %cst_50 = arith.constant dense<0.000000e+00> : vector<8xf32>
    %188 = vector.multi_reduction <add>, %187, %cst_50 [1] : vector<8x128xf32> to vector<8xf32>
    %189 = vector.shape_cast %188 : vector<8xf32> to vector<8x1xf32>
    %cst_51 = arith.constant 1.280000e+02 : f32
    %190 = vector.broadcast %cst_51 : f32 to vector<8x1xf32>
    %191 = arith.divf %189, %190 : vector<8x1xf32>
    %192 = vector.broadcast %184 : vector<8x1xf32> to vector<8x128xf32>
    %193 = arith.subf %180, %192 : vector<8x128xf32>
    %cst_52 = arith.constant 9.99999974E-6 : f32
    %194 = vector.broadcast %cst_52 : f32 to vector<8x1xf32>
    %195 = arith.addf %191, %194 : vector<8x1xf32>
    %196 = math.rsqrt %195 : vector<8x1xf32>
    %197 = vector.broadcast %196 : vector<8x1xf32> to vector<8x128xf32>
    %198 = arith.mulf %193, %197 : vector<8x128xf32>
    %199 = vector.broadcast %30 : vector<1x128xf32> to vector<8x128xf32>
    %200 = arith.mulf %198, %199 : vector<8x128xf32>
    %201 = vector.broadcast %31 : vector<1x128xf32> to vector<8x128xf32>
    %202 = arith.addf %200, %201 : vector<8x128xf32>
    %c0_53 = arith.constant 0 : index
    %c0_54 = arith.constant 0 : index
    %203 = vector.load %arg11[%c0_53, %c0_54] : memref<8x128xf32, #tpu.memory_space<vmem>>, vector<8x128xf32>
    tpu.vector_store %arg11[%c0_53, %c0_54], %202 {strides = array<i32>} : memref<8x128xf32, #tpu.memory_space<vmem>>, vector<8x128xf32>,
    return
  }
  func.func @transform_0(%arg0: i32, %arg1: i32) -> (i32, i32, i32) {
    %c0_i32 = arith.constant 0 : i32
    %c0_i32_0 = arith.constant 0 : i32
    %c0_i32_1 = arith.constant 0 : i32
    return %arg0, %c0_i32, %c0_i32_0 : i32, i32, i32
  }
  func.func @transform_1(%arg0: i32, %arg1: i32) -> (i32, i32) {
    %c0_i32 = arith.constant 0 : i32
    %c0_i32_0 = arith.constant 0 : i32
    return %arg0, %c0_i32 : i32, i32
  }
  func.func @transform_2(%arg0: i32, %arg1: i32) -> (i32, i32, i32) {
    %c0_i32 = arith.constant 0 : i32
    %c0_i32_0 = arith.constant 0 : i32
    %c0_i32_1 = arith.constant 0 : i32
    %c0_i32_2 = arith.constant 0 : i32
    return %c0_i32, %c0_i32_0, %c0_i32_1 : i32, i32, i32
  }
  func.func @transform_3(%arg0: i32, %arg1: i32) -> (i32, i32, i32) {
    %c0_i32 = arith.constant 0 : i32
    %c0_i32_0 = arith.constant 0 : i32
    %c0_i32_1 = arith.constant 0 : i32
    %c0_i32_2 = arith.constant 0 : i32
    return %c0_i32, %c0_i32_0, %c0_i32_1 : i32, i32, i32
  }
  func.func @transform_4(%arg0: i32, %arg1: i32) -> (i32, i32, i32) {
    %c0_i32 = arith.constant 0 : i32
    %c0_i32_0 = arith.constant 0 : i32
    %c0_i32_1 = arith.constant 0 : i32
    %c0_i32_2 = arith.constant 0 : i32
    return %c0_i32, %c0_i32_0, %c0_i32_1 : i32, i32, i32
  }
  func.func @transform_5(%arg0: i32, %arg1: i32) -> (i32, i32, i32) {
    %c0_i32 = arith.constant 0 : i32
    %c0_i32_0 = arith.constant 0 : i32
    %c0_i32_1 = arith.constant 0 : i32
    %c0_i32_2 = arith.constant 0 : i32
    return %c0_i32, %c0_i32_0, %c0_i32_1 : i32, i32, i32
  }
  func.func @transform_6(%arg0: i32, %arg1: i32) -> (i32, i32, i32) {
    %c0_i32 = arith.constant 0 : i32
    %c0_i32_0 = arith.constant 0 : i32
    %c0_i32_1 = arith.constant 0 : i32
    %c0_i32_2 = arith.constant 0 : i32
    return %c0_i32, %c0_i32_0, %c0_i32_1 : i32, i32, i32
  }
  func.func @transform_7(%arg0: i32, %arg1: i32) -> (i32, i32, i32) {
    %c0_i32 = arith.constant 0 : i32
    %c0_i32_0 = arith.constant 0 : i32
    %c0_i32_1 = arith.constant 0 : i32
    %c0_i32_2 = arith.constant 0 : i32
    return %c0_i32, %c0_i32_0, %c0_i32_1 : i32, i32, i32
  }
  func.func @transform_8(%arg0: i32, %arg1: i32) -> (i32, i32, i32) {
    %c0_i32 = arith.constant 0 : i32
    %c0_i32_0 = arith.constant 0 : i32
    %c0_i32_1 = arith.constant 0 : i32
    %c0_i32_2 = arith.constant 0 : i32
    return %c0_i32, %c0_i32_0, %c0_i32_1 : i32, i32, i32
  }
  func.func @transform_9(%arg0: i32, %arg1: i32) -> (i32, i32) {
    %c0_i32 = arith.constant 0 : i32
    %c0_i32_0 = arith.constant 0 : i32
    return %arg0, %c0_i32 : i32, i32
  }
}

</mosaic_0001>

<llo_original>
// kernel: _lambda_.1
$region0: #{_lambda_.1}
  #allocation0 [shape = 'u32[]', space=smem, size = 0x4, offset = 0x4, fixed_abs, tag = 'smem constant byte address 0x4 - core index']
  #allocation1 [shape = 'u32[144,128]{1,0:T(1,128)}', space=vmem, size = 0x12000, scoped, tag = 'internal scratch']
  %s0 = inlined_call_operand.vmem [shape: f32[2,1,8], index: 0, kind: input, shape index: {}]
  %s1 = inlined_call_operand.vmem [shape: f32[16,128], index: 1, kind: input, shape index: {}]
  %s2 = inlined_call_operand.hbm [shape: bf16[5,128,384], index: 2, kind: input, shape index: {}]
  %s3 = inlined_call_operand.vmem [shape: f32[5,1,384], index: 3, kind: input, shape index: {}]
  %s4 = inlined_call_operand.hbm [shape: bf16[5,128,128], index: 4, kind: input, shape index: {}]
  %s5 = inlined_call_operand.hbm [shape: bf16[5,128,256], index: 5, kind: input, shape index: {}]
  %s6 = inlined_call_operand.vmem [shape: f32[5,1,256], index: 6, kind: input, shape index: {}]
  %s7 = inlined_call_operand.hbm [shape: bf16[5,256,128], index: 7, kind: input, shape index: {}]
  %s8 = inlined_call_operand.vmem [shape: f32[5,6,128], index: 8, kind: input, shape index: {}]
  %s9 = inlined_call_operand.hbm [shape: f32[16,128], index: 9, kind: output, shape index: {}]
  %s10 = sld [smem:[#allocation0]]
  $region89: #{_lambda_.1} parent=0
    _
  %s12 = ssub.s32 1, %s10
  %s13 = scalar_select 0, %s12, %s10
  $region1: #{_lambda_.1} parent=0
    #allocation2 [shape = 'u8[491520]{0}', space=vmem, size = 0x78000, scoped, tag = 'input window, operand 2, single buffered']
    #allocation3 [shape = 's32[2]{0}', space=sflag, size = 0x8, scoped, tag = 'scoped memory for _lambda_.1']
    #allocation4 [shape = 's32[2]{0}', space=sflag, size = 0x8, scoped, tag = 'scoped memory for _lambda_.1']
    #allocation5 [shape = 'u8[163840]{0}', space=vmem, size = 0x28000, scoped, tag = 'input window, operand 4, single buffered']
    #allocation6 [shape = 's32[1]{0}', space=sflag, size = 0x4, scoped, tag = 'scoped memory for _lambda_.1']
    #allocation7 [shape = 'u8[327680]{0}', space=vmem, size = 0x50000, scoped, tag = 'input window, operand 5, single buffered']
    #allocation8 [shape = 'u8[327680]{0}', space=vmem, size = 0x50000, scoped, tag = 'input window, operand 7, single buffered']
    #allocation9 [shape = 's32[1]{0}', space=sflag, size = 0x4, scoped, tag = 'scoped memory for _lambda_.1']
    #allocation10 [shape = 'u8[8192]{0}', space=vmem, size = 0x2000, scoped, tag = 'output window, operand 0']
    %14 = vsyncpa [#allocation3], 0
    %15 = vsyncpa [#allocation6], 0
    %16 = vsyncpa [#allocation9], 0
    %17 = vsyncpa [#allocation4], 0
    %s18 = scalar_lea.sflag [#allocation4], 1
    %19 = vsyncpa %s18, 0
    loop: start=0, step=1, limit=12
    $region2: #{_lambda_.1} parent=1 // loop_pre_header
      _
    $region3: #{_lambda_.1} parent=1 // loop_header
      %s21 = sphi 0, %s25
      %p22 = scmp.ge.s32.totalorder %s21, 12
      %s28 = sphi 0, %s40
      %s29 = sphi 0, %s36
      %s30 = sphi 0, %s28
      %s31 = sphi 0, %s29
      %s32 = sphi 0, %s30
      %s33 = sphi 0, %s31
      %s43 = sphi 0, %s45
      %s46 = sphi 0, %s43
      %s47 = sphi 0, %s46
      %s63 = sphi 0, %s47
      %s69 = sphi 0, %s71
      %s72 = sphi 0, %s69
      %s73 = sphi 0, %s72
      %s89 = sphi 0, %s73
      %s93 = sphi 0, %s93
      %s95 = sphi 0, %s93
      %s96 = sphi 0, %s95
      %s110 = sphi 0, %s96
      %s114 = sphi 0, %s114
      %s116 = sphi 0, %s114
      %s117 = sphi 0, %s116
      %s131 = sphi 0, %s117
      %s135 = sphi 0, %s135
      %s137 = sphi 0, %s135
      %s138 = sphi 0, %s137
      %s152 = sphi 0, %s138
      %s156 = sphi 0, %s156
      %s158 = sphi 0, %s156
      %s159 = sphi 0, %s158
      %s173 = sphi 0, %s159
      %s177 = sphi 0, %s177
      %s179 = sphi 0, %s177
      %s180 = sphi 0, %s179
      %s194 = sphi 0, %s180
      %s198 = sphi 0, %s198
      %s200 = sphi 0, %s198
      %s201 = sphi 0, %s200
      %s215 = sphi 0, %s201
      %s219 = sphi 0, %s219
      %s221 = sphi 0, %s219
      %s222 = sphi 0, %s221
      %s236 = sphi 0, %s222
      %s242 = sphi 0, %s244
      %s245 = sphi 0, %s242
      %s246 = sphi 0, %s245
      %s262 = sphi 0, %s246
    $region4: #{_lambda_.1} parent=1 // loop_header_branch
      %24 = sbr.rel (%p22) target = $region8
    $region5: #{_lambda_.1} parent=1 // loop_body
      %s26 = ssub.s32 %s21, 1
      %s27 = ssub.s32 %s21, 2
      %s34 = sadd.s32 1, %s29
      %p35 = scmp.ge.s32.totalorder %s34, 5
      %s36 = scalar_select %p35, 0, %s34
      %s37 = sadd.s32 1, %s28
      %s38 = scalar_select %p35, %s37, %s28
      %p39 = scmp.ge.s32.totalorder %s38, 2
      %s40 = scalar_select %p39, 0, %s38
      %s41 = ssub.s32 %s28, %s40
      %p42 = scmp.eq.s32.totalorder %s41, 0
      %s44 = sadd.s32 %s43, 1
      %s45 = scalar_select %p42, %s43, %s44
      %p48 = pneg %p42
      %p49 = scmp.eq.s32.totalorder %s21, 9
      %p50 = por %p48, %p49
      %p51 = scmp.ne.s32.totalorder %s43, %s46
      %p52 = scmp.eq.s32.totalorder %s21, 0
      %p53 = por %p51, %p52
      %p54 = scmp.ne.s32.totalorder %s43, %s46
      %p55 = scmp.eq.s32.totalorder %s26, 9
      %p56 = por %p54, %p55
      %p57 = scmp.ne.s32.totalorder %s46, %s47
      %p58 = scmp.eq.s32.totalorder %s26, 0
      %p59 = por %p57, %p58
      %p60 = scmp.ne.s32.totalorder %s46, %s47
      %p61 = scmp.eq.s32.totalorder %s27, 9
      %p62 = por %p60, %p61
      %p64 = scmp.ne.s32.totalorder %s47, %s63
      %p65 = scmp.eq.s32.totalorder %s27, 0
      %p66 = por %p64, %p65
      %s67 = ssub.s32 %s28, %s40
      %p68 = scmp.eq.s32.totalorder %s67, 0
      %s70 = sadd.s32 %s69, 1
      %s71 = scalar_select %p68, %s69, %s70
      %p74 = pneg %p68
      %p75 = scmp.eq.s32.totalorder %s21, 9
      %p76 = por %p74, %p75
      %p77 = scmp.ne.s32.totalorder %s69, %s72
      %p78 = scmp.eq.s32.totalorder %s21, 0
      %p79 = por %p77, %p78
      %p80 = scmp.ne.s32.totalorder %s69, %s72
      %p81 = scmp.eq.s32.totalorder %s26, 9
      %p82 = por %p80, %p81
      %p83 = scmp.ne.s32.totalorder %s72, %s73
      %p84 = scmp.eq.s32.totalorder %s26, 0
      %p85 = por %p83, %p84
      %p86 = scmp.ne.s32.totalorder %s72, %s73
      %p87 = scmp.eq.s32.totalorder %s27, 9
      %p88 = por %p86, %p87
      %p90 = scmp.ne.s32.totalorder %s73, %s89
      %p91 = scmp.eq.s32.totalorder %s27, 0
      %p92 = por %p90, %p91
      %s94 = sadd.s32 %s93, 1
      %p97 = scmp.eq.s32.totalorder %s21, 9
      %p98 = scmp.ne.s32.totalorder %s93, %s95
      %p99 = scmp.eq.s32.totalorder %s21, 0
      %p100 = por %p98, %p99
      %p101 = scmp.ne.s32.totalorder %s93, %s95
      %p102 = scmp.eq.s32.totalorder %s26, 9
      %p103 = por %p101, %p102
      %p104 = scmp.ne.s32.totalorder %s95, %s96
      %p105 = scmp.eq.s32.totalorder %s26, 0
      %p106 = por %p104, %p105
      %p107 = scmp.ne.s32.totalorder %s95, %s96
      %p108 = scmp.eq.s32.totalorder %s27, 9
      %p109 = por %p107, %p108
      %p111 = scmp.ne.s32.totalorder %s96, %s110
      %p112 = scmp.eq.s32.totalorder %s27, 0
      %p113 = por %p111, %p112
      %s115 = sadd.s32 %s114, 1
      %p118 = scmp.eq.s32.totalorder %s21, 9
      %p119 = scmp.ne.s32.totalorder %s114, %s116
      %p120 = scmp.eq.s32.totalorder %s21, 0
      %p121 = por %p119, %p120
      %p122 = scmp.ne.s32.totalorder %s114, %s116
      %p123 = scmp.eq.s32.totalorder %s26, 9
      %p124 = por %p122, %p123
      %p125 = scmp.ne.s32.totalorder %s116, %s117
      %p126 = scmp.eq.s32.totalorder %s26, 0
      %p127 = por %p125, %p126
      %p128 = scmp.ne.s32.totalorder %s116, %s117
      %p129 = scmp.eq.s32.totalorder %s27, 9
      %p130 = por %p128, %p129
      %p132 = scmp.ne.s32.totalorder %s117, %s131
      %p133 = scmp.eq.s32.totalorder %s27, 0
      %p134 = por %p132, %p133
      %s136 = sadd.s32 %s135, 1
      %p139 = scmp.eq.s32.totalorder %s21, 9
      %p140 = scmp.ne.s32.totalorder %s135, %s137
      %p141 = scmp.eq.s32.totalorder %s21, 0
      %p142 = por %p140, %p141
      %p143 = scmp.ne.s32.totalorder %s135, %s137
      %p144 = scmp.eq.s32.totalorder %s26, 9
      %p145 = por %p143, %p144
      %p146 = scmp.ne.s32.totalorder %s137, %s138
      %p147 = scmp.eq.s32.totalorder %s26, 0
      %p148 = por %p146, %p147
      %p149 = scmp.ne.s32.totalorder %s137, %s138
      %p150 = scmp.eq.s32.totalorder %s27, 9
      %p151 = por %p149, %p150
      %p153 = scmp.ne.s32.totalorder %s138, %s152
      %p154 = scmp.eq.s32.totalorder %s27, 0
      %p155 = por %p153, %p154
      %s157 = sadd.s32 %s156, 1
      %p160 = scmp.eq.s32.totalorder %s21, 9
      %p161 = scmp.ne.s32.totalorder %s156, %s158
      %p162 = scmp.eq.s32.totalorder %s21, 0
      %p163 = por %p161, %p162
      %p164 = scmp.ne.s32.totalorder %s156, %s158
      %p165 = scmp.eq.s32.totalorder %s26, 9
      %p166 = por %p164, %p165
      %p167 = scmp.ne.s32.totalorder %s158, %s159
      %p168 = scmp.eq.s32.totalorder %s26, 0
      %p169 = por %p167, %p168
      %p170 = scmp.ne.s32.totalorder %s158, %s159
      %p171 = scmp.eq.s32.totalorder %s27, 9
      %p172 = por %p170, %p171
      %p174 = scmp.ne.s32.totalorder %s159, %s173
      %p175 = scmp.eq.s32.totalorder %s27, 0
      %p176 = por %p174, %p175
      %s178 = sadd.s32 %s177, 1
      %p181 = scmp.eq.s32.totalorder %s21, 9
      %p182 = scmp.ne.s32.totalorder %s177, %s179
      %p183 = scmp.eq.s32.totalorder %s21, 0
      %p184 = por %p182, %p183
      %p185 = scmp.ne.s32.totalorder %s177, %s179
      %p186 = scmp.eq.s32.totalorder %s26, 9
      %p187 = por %p185, %p186
      %p188 = scmp.ne.s32.totalorder %s179, %s180
      %p189 = scmp.eq.s32.totalorder %s26, 0
      %p190 = por %p188, %p189
      %p191 = scmp.ne.s32.totalorder %s179, %s180
      %p192 = scmp.eq.s32.totalorder %s27, 9
      %p193 = por %p191, %p192
      %p195 = scmp.ne.s32.totalorder %s180, %s194
      %p196 = scmp.eq.s32.totalorder %s27, 0
      %p197 = por %p195, %p196
      %s199 = sadd.s32 %s198, 1
      %p202 = scmp.eq.s32.totalorder %s21, 9
      %p203 = scmp.ne.s32.totalorder %s198, %s200
      %p204 = scmp.eq.s32.totalorder %s21, 0
      %p205 = por %p203, %p204
      %p206 = scmp.ne.s32.totalorder %s198, %s200
      %p207 = scmp.eq.s32.totalorder %s26, 9
      %p208 = por %p206, %p207
      %p209 = scmp.ne.s32.totalorder %s200, %s201
      %p210 = scmp.eq.s32.totalorder %s26, 0
      %p211 = por %p209, %p210
      %p212 = scmp.ne.s32.totalorder %s200, %s201
      %p213 = scmp.eq.s32.totalorder %s27, 9
      %p214 = por %p212, %p213
      %p216 = scmp.ne.s32.totalorder %s201, %s215
      %p217 = scmp.eq.s32.totalorder %s27, 0
      %p218 = por %p216, %p217
      %s220 = sadd.s32 %s219, 1
      %p223 = scmp.eq.s32.totalorder %s21, 9
      %p224 = scmp.ne.s32.totalorder %s219, %s221
      %p225 = scmp.eq.s32.totalorder %s21, 0
      %p226 = por %p224, %p225
      %p227 = scmp.ne.s32.totalorder %s219, %s221
      %p228 = scmp.eq.s32.totalorder %s26, 9
      %p229 = por %p227, %p228
      %p230 = scmp.ne.s32.totalorder %s221, %s222
      %p231 = scmp.eq.s32.totalorder %s26, 0
      %p232 = por %p230, %p231
      %p233 = scmp.ne.s32.totalorder %s221, %s222
      %p234 = scmp.eq.s32.totalorder %s27, 9
      %p235 = por %p233, %p234
      %p237 = scmp.ne.s32.totalorder %s222, %s236
      %p238 = scmp.eq.s32.totalorder %s27, 0
      %p239 = por %p237, %p238
      %s240 = ssub.s32 %s28, %s40
      %p241 = scmp.eq.s32.totalorder %s240, 0
      %s243 = sadd.s32 %s242, 1
      %s244 = scalar_select %p241, %s242, %s243
      %p247 = pneg %p241
      %p248 = scmp.eq.s32.totalorder %s21, 9
      %p249 = por %p247, %p248
      %p250 = scmp.ne.s32.totalorder %s242, %s245
      %p251 = scmp.eq.s32.totalorder %s21, 0
      %p252 = por %p250, %p251
      %p253 = scmp.ne.s32.totalorder %s242, %s245
      %p254 = scmp.eq.s32.totalorder %s26, 9
      %p255 = por %p253, %p254
      %p256 = scmp.ne.s32.totalorder %s245, %s246
      %p257 = scmp.eq.s32.totalorder %s26, 0
      %p258 = por %p256, %p257
      %p259 = scmp.ne.s32.totalorder %s245, %s246
      %p260 = scmp.eq.s32.totalorder %s27, 9
      %p261 = por %p259, %p260
      %p263 = scmp.ne.s32.totalorder %s246, %s262
      %p264 = scmp.eq.s32.totalorder %s27, 0
      %p265 = por %p263, %p264
      %p266 = scmp.le.s32.totalorder 1, %s21
      %p267 = scmp.lt.s32.totalorder %s21, 11
      %p268 = pnand %p266, %p267
      %p269 = pneg %p268
      // Predicated region
      $region9: #{_lambda_.1} parent=5 // pred_check
        _
      $region10: #{_lambda_.1} parent=5 // pred_check_branch
        %271 = sbr.rel (%p268) target = $region12
      $region11: #{_lambda_.1} parent=5 // pred_region
        %s272 = ssub.s32 %s21, 1
        // Predicated region
        $region13: #{_lambda_.1} parent=11 // pred_check
          %p273 = pneg %p106
        $region14: #{_lambda_.1} parent=11 // pred_check_branch
          %275 = sbr.rel (%p273) target = $region16
        $region15: #{_lambda_.1} parent=11 // pred_region
          %s277 = ssub.s32 15360, 15360
          %278 = vsyncadd [#allocation3], %s277
          %s279 = sshll.u32 [#allocation2], 4
          %s280 = int_to_ptr.vmem [resolvable:$true] %s279
          %285 = dma.hbm_to_vmem [thread:$0]  %s2, 15360, %s280, [#allocation3], 192, 192, 12
        $region16: #{_lambda_.1} parent=11 // pred_fallthru
          _
        // Predicated region
        $region17: #{_lambda_.1} parent=11 // pred_check
          %p286 = pneg %p127
        $region18: #{_lambda_.1} parent=11 // pred_check_branch
          %288 = sbr.rel (%p286) target = $region20
        $region19: #{_lambda_.1} parent=11 // pred_region
          _
        $region20: #{_lambda_.1} parent=11 // pred_fallthru
          _
        // Predicated region
        $region21: #{_lambda_.1} parent=11 // pred_check
          %p289 = pneg %p148
        $region22: #{_lambda_.1} parent=11 // pred_check_branch
          %291 = sbr.rel (%p289) target = $region24
        $region23: #{_lambda_.1} parent=11 // pred_region
          %s293 = ssub.s32 5120, 5120
          %294 = vsyncadd [#allocation6], %s293
          %s295 = sshll.u32 [#allocation5], 4
          %s296 = int_to_ptr.vmem [resolvable:$true] %s295
          %301 = dma.hbm_to_vmem [thread:$0]  %s4, 5120, %s296, [#allocation6], 64, 64, 4
        $region24: #{_lambda_.1} parent=11 // pred_fallthru
          _
        // Predicated region
        $region25: #{_lambda_.1} parent=11 // pred_check
          %p302 = pneg %p169
        $region26: #{_lambda_.1} parent=11 // pred_check_branch
          %304 = sbr.rel (%p302) target = $region28
        $region27: #{_lambda_.1} parent=11 // pred_region
          %s306 = ssub.s32 10240, 10240
          %307 = vsyncadd [#allocation6], %s306
          %s308 = sshll.u32 [#allocation7], 4
          %s309 = int_to_ptr.vmem [resolvable:$true] %s308
          %314 = dma.hbm_to_vmem [thread:$0]  %s5, 10240, %s309, [#allocation6], 128, 128, 8
        $region28: #{_lambda_.1} parent=11 // pred_fallthru
          _
        // Predicated region
        $region29: #{_lambda_.1} parent=11 // pred_check
          %p315 = pneg %p190
        $region30: #{_lambda_.1} parent=11 // pred_check_branch
          %317 = sbr.rel (%p315) target = $region32
        $region31: #{_lambda_.1} parent=11 // pred_region
          _
        $region32: #{_lambda_.1} parent=11 // pred_fallthru
          _
        // Predicated region
        $region33: #{_lambda_.1} parent=11 // pred_check
          %p318 = pneg %p211
        $region34: #{_lambda_.1} parent=11 // pred_check_branch
          %320 = sbr.rel (%p318) target = $region36
        $region35: #{_lambda_.1} parent=11 // pred_region
          %s322 = ssub.s32 10240, 10240
          %323 = vsyncadd [#allocation9], %s322
          %s324 = sshll.u32 [#allocation8], 4
          %s325 = int_to_ptr.vmem [resolvable:$true] %s324
          %330 = dma.hbm_to_vmem [thread:$0]  %s7, 10240, %s325, [#allocation9], 64, 64, 4
        $region36: #{_lambda_.1} parent=11 // pred_fallthru
          _
        // Predicated region
        $region37: #{_lambda_.1} parent=11 // pred_check
          %p331 = pneg %p232
        $region38: #{_lambda_.1} parent=11 // pred_check_branch
          %333 = sbr.rel (%p331) target = $region40
        $region39: #{_lambda_.1} parent=11 // pred_region
          _
        $region40: #{_lambda_.1} parent=11 // pred_fallthru
          _
      $region12: #{_lambda_.1} parent=5 // pred_fallthru
        _
      %p334 = scmp.lt.s32.totalorder %s21, 10
      // Predicated region
      $region41: #{_lambda_.1} parent=5 // pred_check
        %p335 = pneg %p334
      $region42: #{_lambda_.1} parent=5 // pred_check_branch
        %337 = sbr.rel (%p335) target = $region44
      $region43: #{_lambda_.1} parent=5 // pred_region
        // Predicated region
        $region45: #{_lambda_.1} parent=43 // pred_check
          %p338 = pneg %p53
        $region46: #{_lambda_.1} parent=43 // pred_check_branch
          %340 = sbr.rel (%p338) target = $region48
        $region47: #{_lambda_.1} parent=43 // pred_region
          %p341 = scmp.lt.s32.totalorder %s28, 1
          %s342 = scalar_select %p341, %s28, 1
          %s343 = scalar_lea.vmem %s0, %s342
        $region48: #{_lambda_.1} parent=43 // pred_fallthru
          _
        // Predicated region
        $region49: #{_lambda_.1} parent=43 // pred_check
          %p344 = pneg %p79
        $region50: #{_lambda_.1} parent=43 // pred_check_branch
          %346 = sbr.rel (%p344) target = $region52
        $region51: #{_lambda_.1} parent=43 // pred_region
          %p347 = scmp.lt.s32.totalorder %s28, 1
          %s348 = scalar_select %p347, %s28, 1
          %s349 = smul.addr %s348, 8
          %s350 = scalar_lea.vmem %s1, %s349
        $region52: #{_lambda_.1} parent=43 // pred_fallthru
          _
      $region44: #{_lambda_.1} parent=5 // pred_fallthru
        _
      %p351 = scmp.le.s32.totalorder 1, %s21
      %p352 = scmp.lt.s32.totalorder %s21, 11
      %p353 = pnand %p351, %p352
      %p354 = pneg %p353
      // Predicated region
      $region53: #{_lambda_.1} parent=5 // pred_check
        _
      $region54: #{_lambda_.1} parent=5 // pred_check_branch
        %356 = sbr.rel (%p353) target = $region56
      $region55: #{_lambda_.1} parent=5 // pred_region
        %s357 = ssub.s32 %s21, 1
        // Predicated region
        $region57: #{_lambda_.1} parent=55 // pred_check
          %p358 = pneg %p106
        $region58: #{_lambda_.1} parent=55 // pred_check_branch
          %360 = sbr.rel (%p358) target = $region60
        $region59: #{_lambda_.1} parent=55 // pred_region
          %361 = dma.done [#allocation3], 15360
        $region60: #{_lambda_.1} parent=55 // pred_fallthru
          _
        // Predicated region
        $region61: #{_lambda_.1} parent=55 // pred_check
          %p362 = pneg %p148
        $region62: #{_lambda_.1} parent=55 // pred_check_branch
          %364 = sbr.rel (%p362) target = $region64
        $region63: #{_lambda_.1} parent=55 // pred_region
          %365 = dma.done [#allocation6], 5120
        $region64: #{_lambda_.1} parent=55 // pred_fallthru
          _
        // Predicated region
        $region65: #{_lambda_.1} parent=55 // pred_check
          %p366 = pneg %p169
        $region66: #{_lambda_.1} parent=55 // pred_check_branch
          %368 = sbr.rel (%p366) target = $region68
        $region67: #{_lambda_.1} parent=55 // pred_region
          %369 = dma.done [#allocation6], 10240
        $region68: #{_lambda_.1} parent=55 // pred_fallthru
          _
        // Predicated region
        $region69: #{_lambda_.1} parent=55 // pred_check
          %p370 = pneg %p211
        $region70: #{_lambda_.1} parent=55 // pred_check_branch
          %372 = sbr.rel (%p370) target = $region72
        $region71: #{_lambda_.1} parent=55 // pred_region
          %373 = dma.done [#allocation9], 10240
        $region72: #{_lambda_.1} parent=55 // pred_fallthru
          _
        %p374 = scmp.lt.s32.totalorder %s30, 1
        %s375 = scalar_select %p374, %s30, 1
        %s376 = scalar_lea.vmem %s0, %s375
        %p377 = pneg %p59
        %p378 = pneg %p56
        %p379 = scmp.lt.s32.totalorder %s30, 1
        %s380 = scalar_select %p379, %s30, 1
        %s381 = smul.addr %s380, 8
        %s382 = scalar_lea.vmem %s1, %s381
        %p383 = pneg %p85
        %p384 = pneg %p82
        %p385 = pneg %p106
        %p386 = pneg %p103
        %p387 = pneg %p127
        %p388 = pneg %p124
        %p389 = pneg %p148
        %p390 = pneg %p145
        %p391 = pneg %p169
        %p392 = pneg %p166
        %p393 = pneg %p190
        %p394 = pneg %p187
        %p395 = pneg %p211
        %p396 = pneg %p208
        %p397 = pneg %p232
        %p398 = pneg %p229
        %p399 = pneg %p258
        %p400 = pneg %p255
        %s401 = sand.u32 %s245, 1
        %s402 = scalar_lea.sflag [#allocation4], %s401
        %s403 = sand.u32 %s245, 1
        %s404 = smul.addr %s403, 8
        %s405 = scalar_lea.vmem [#allocation10], %s404
        %p406 = scmp.lt.s32.totalorder %s30, 1
        %s407 = scalar_select %p406, %s30, 1
        %s408 = scalar_lea.vmem %s0, %s407
        %p409 = scmp.lt.s32.totalorder %s30, 1
        %s410 = scalar_select %p409, %s30, 1
        %s411 = smul.addr %s410, 8
        %s412 = scalar_lea.vmem %s1, %s411
        %p414 = scmp.eq.s32.totalorder %s31, 0
        // Predicated region
        $region73: #{_lambda_.1} parent=55 // pred_check
          %p415 = pneg %p414
        $region74: #{_lambda_.1} parent=55 // pred_check_branch
          %417 = sbr.rel (%p415) target = $region76
        $region75: #{_lambda_.1} parent=55 // pred_region
          %v418 = vld [vmem:[%s412] sm:$0xff]
          %419 = vst [vmem:[%s405] sm:$0xff] %v418
        $region76: #{_lambda_.1} parent=55 // pred_fallthru
          _
        %v420 = vld [vmem:[%s405] sm:$0xff]
        %v421 = vpack.c.bf16 %v420, %v420
        %s422 = smul.u32 %s31, 48
        %s423 = smul.addr %s422, 4
        %s424 = scalar_lea.vmem [#allocation2], %s423
        %v425 = vld [vmem:[%s424] sm:$0xff]
        %v426 = vld [vmem:[%s424 + $0x8] sm:$0xf]
        %v427 = vld [vmem:[%s424 + $0xc] sm:$0xff]
        %v428 = vld [vmem:[%s424 + $0x14] sm:$0xf]
        %v429 = vld [vmem:[%s424 + $0x18] sm:$0xff]
        %v430 = vld [vmem:[%s424 + $0x20] sm:$0xf]
        %v431 = vld [vmem:[%s424 + $0x24] sm:$0xff]
        %v432 = vld [vmem:[%s424 + $0x2c] sm:$0xf]
        %v433 = vld [vmem:[%s424 + $0x30] sm:$0xff]
        %v434 = vld [vmem:[%s424 + $0x38] sm:$0xf]
        %v435 = vld [vmem:[%s424 + $0x3c] sm:$0xff]
        %v436 = vld [vmem:[%s424 + $0x44] sm:$0xf]
        %v437 = vld [vmem:[%s424 + $0x48] sm:$0xff]
        %v438 = vld [vmem:[%s424 + $0x50] sm:$0xf]
        %v439 = vld [vmem:[%s424 + $0x54] sm:$0xff]
        %v440 = vld [vmem:[%s424 + $0x5c] sm:$0xf]
        %v441 = vld [vmem:[%s424 + $0x60] sm:$0xff]
        %v442 = vld [vmem:[%s424 + $0x68] sm:$0xf]
        %v443 = vld [vmem:[%s424 + $0x6c] sm:$0xff]
        %v444 = vld [vmem:[%s424 + $0x74] sm:$0xf]
        %v445 = vld [vmem:[%s424 + $0x78] sm:$0xff]
        %v446 = vld [vmem:[%s424 + $0x80] sm:$0xf]
        %v447 = vld [vmem:[%s424 + $0x84] sm:$0xff]
        %v448 = vld [vmem:[%s424 + $0x8c] sm:$0xf]
        %v449 = vld [vmem:[%s424 + $0x90] sm:$0xff]
        %v450 = vld [vmem:[%s424 + $0x98] sm:$0xf]
        %v451 = vld [vmem:[%s424 + $0x9c] sm:$0xff]
        %v452 = vld [vmem:[%s424 + $0xa4] sm:$0xf]
        %v453 = vld [vmem:[%s424 + $0xa8] sm:$0xff]
        %v454 = vld [vmem:[%s424 + $0xb0] sm:$0xf]
        %v455 = vld [vmem:[%s424 + $0xb4] sm:$0xff]
        %v456 = vld [vmem:[%s424 + $0xbc] sm:$0xf]
        %s457 = smul.u32 %s31, 3
        %s458 = scalar_lea.vmem %s3, %s457
        %v459 = vld [vmem:[%s458] sm:$0x7]
        %s460 = smul.u32 %s31, 16
        %s461 = smul.addr %s460, 4
        %s462 = scalar_lea.vmem [#allocation5], %s461
        %v463 = vld [vmem:[%s462] sm:$0xf]
        %v464 = vld [vmem:[%s462 + $0x4] sm:$0xf]
        %v465 = vld [vmem:[%s462 + $0x8] sm:$0xf]
        %v466 = vld [vmem:[%s462 + $0xc] sm:$0xf]
        %v467 = vld [vmem:[%s462 + $0x10] sm:$0xf]
        %v468 = vld [vmem:[%s462 + $0x14] sm:$0xf]
        %v469 = vld [vmem:[%s462 + $0x18] sm:$0xf]
        %v470 = vld [vmem:[%s462 + $0x1c] sm:$0xf]
        %v471 = vld [vmem:[%s462 + $0x20] sm:$0xf]
        %v472 = vld [vmem:[%s462 + $0x24] sm:$0xf]
        %v473 = vld [vmem:[%s462 + $0x28] sm:$0xf]
        %v474 = vld [vmem:[%s462 + $0x2c] sm:$0xf]
        %v475 = vld [vmem:[%s462 + $0x30] sm:$0xf]
        %v476 = vld [vmem:[%s462 + $0x34] sm:$0xf]
        %v477 = vld [vmem:[%s462 + $0x38] sm:$0xf]
        %v478 = vld [vmem:[%s462 + $0x3c] sm:$0xf]
        %s479 = smul.u32 %s31, 32
        %s480 = smul.addr %s479, 4
        %s481 = scalar_lea.vmem [#allocation7], %s480
        %v482 = vld [vmem:[%s481] sm:$0xff]
        %v483 = vld [vmem:[%s481 + $0x8] sm:$0xff]
        %v484 = vld [vmem:[%s481 + $0x10] sm:$0xff]
        %v485 = vld [vmem:[%s481 + $0x18] sm:$0xff]
        %v486 = vld [vmem:[%s481 + $0x20] sm:$0xff]
        %v487 = vld [vmem:[%s481 + $0x28] sm:$0xff]
        %v488 = vld [vmem:[%s481 + $0x30] sm:$0xff]
        %v489 = vld [vmem:[%s481 + $0x38] sm:$0xff]
        %v490 = vld [vmem:[%s481 + $0x40] sm:$0xff]
        %v491 = vld [vmem:[%s481 + $0x48] sm:$0xff]
        %v492 = vld [vmem:[%s481 + $0x50] sm:$0xff]
        %v493 = vld [vmem:[%s481 + $0x58] sm:$0xff]
        %v494 = vld [vmem:[%s481 + $0x60] sm:$0xff]
        %v495 = vld [vmem:[%s481 + $0x68] sm:$0xff]
        %v496 = vld [vmem:[%s481 + $0x70] sm:$0xff]
        %v497 = vld [vmem:[%s481 + $0x78] sm:$0xff]
        %s498 = smul.u32 %s31, 2
        %s499 = scalar_lea.vmem %s6, %s498
        %v500 = vld [vmem:[%s499] sm:$0x3]
        %s501 = smul.addr %s479, 4
        %s502 = scalar_lea.vmem [#allocation8], %s501
        %v503 = vld [vmem:[%s502] sm:$0xf]
        %v504 = vld [vmem:[%s502 + $0x4] sm:$0xf]
        %v505 = vld [vmem:[%s502 + $0x8] sm:$0xf]
        %v506 = vld [vmem:[%s502 + $0xc] sm:$0xf]
        %v507 = vld [vmem:[%s502 + $0x10] sm:$0xf]
        %v508 = vld [vmem:[%s502 + $0x14] sm:$0xf]
        %v509 = vld [vmem:[%s502 + $0x18] sm:$0xf]
        %v510 = vld [vmem:[%s502 + $0x1c] sm:$0xf]
        %v511 = vld [vmem:[%s502 + $0x20] sm:$0xf]
        %v512 = vld [vmem:[%s502 + $0x24] sm:$0xf]
        %v513 = vld [vmem:[%s502 + $0x28] sm:$0xf]
        %v514 = vld [vmem:[%s502 + $0x2c] sm:$0xf]
        %v515 = vld [vmem:[%s502 + $0x30] sm:$0xf]
        %v516 = vld [vmem:[%s502 + $0x34] sm:$0xf]
        %v517 = vld [vmem:[%s502 + $0x38] sm:$0xf]
        %v518 = vld [vmem:[%s502 + $0x3c] sm:$0xf]
        %v519 = vld [vmem:[%s502 + $0x40] sm:$0xf]
        %v520 = vld [vmem:[%s502 + $0x44] sm:$0xf]
        %v521 = vld [vmem:[%s502 + $0x48] sm:$0xf]
        %v522 = vld [vmem:[%s502 + $0x4c] sm:$0xf]
        %v523 = vld [vmem:[%s502 + $0x50] sm:$0xf]
        %v524 = vld [vmem:[%s502 + $0x54] sm:$0xf]
        %v525 = vld [vmem:[%s502 + $0x58] sm:$0xf]
        %v526 = vld [vmem:[%s502 + $0x5c] sm:$0xf]
        %v527 = vld [vmem:[%s502 + $0x60] sm:$0xf]
        %v528 = vld [vmem:[%s502 + $0x64] sm:$0xf]
        %v529 = vld [vmem:[%s502 + $0x68] sm:$0xf]
        %v530 = vld [vmem:[%s502 + $0x6c] sm:$0xf]
        %v531 = vld [vmem:[%s502 + $0x70] sm:$0xf]
        %v532 = vld [vmem:[%s502 + $0x74] sm:$0xf]
        %v533 = vld [vmem:[%s502 + $0x78] sm:$0xf]
        %v534 = vld [vmem:[%s502 + $0x7c] sm:$0xf]
        %s535 = smul.u32 %s31, 8
        %s536 = scalar_lea.vmem %s8, %s535
        %v537 = vld [vmem:[%s536] sm:$0x3f]
        %v539 = vlaneseq
        %v540 = vshrl.u32 %v539, 7
        %v541 = vsub.s32 0, %v540
        %v542 = vrot.slane %v459, %v541
        %v543 = vlaneseq
        %v544 = vshrl.u32 %v543, 7
        %v545 = vsub.s32 1, %v544
        %v546 = vrot.slane %v459, %v545
        %v547 = vlaneseq
        %v548 = vshrl.u32 %v547, 7
        %v549 = vsub.s32 2, %v548
        %v550 = vrot.slane %v459, %v549
        %v586 = vunpack.c.l.b16 %v425
        %v587 = vunpack.c.h.b16 %v425
        %v588 = vunpack.c.l.b16 %v426
        %v589 = vunpack.c.l.b16 %v427
        %v590 = vunpack.c.h.b16 %v427
        %v591 = vunpack.c.l.b16 %v428
        %v592 = vunpack.c.l.b16 %v429
        %v593 = vunpack.c.h.b16 %v429
        %v594 = vunpack.c.l.b16 %v430
        %v595 = vunpack.c.l.b16 %v431
        %v596 = vunpack.c.h.b16 %v431
        %v597 = vunpack.c.l.b16 %v432
        %v598 = vunpack.c.l.b16 %v433
        %v599 = vunpack.c.h.b16 %v433
        %v600 = vunpack.c.l.b16 %v434
        %v601 = vunpack.c.l.b16 %v435
        %v602 = vunpack.c.h.b16 %v435
        %v603 = vunpack.c.l.b16 %v436
        %v604 = vunpack.c.l.b16 %v437
        %v605 = vunpack.c.h.b16 %v437
        %v606 = vunpack.c.l.b16 %v438
        %v607 = vunpack.c.l.b16 %v439
        %v608 = vunpack.c.h.b16 %v439
        %v609 = vunpack.c.l.b16 %v440
        %v610 = vunpack.c.l.b16 %v441
        %v611 = vunpack.c.h.b16 %v441
        %v612 = vunpack.c.l.b16 %v442
        %v613 = vunpack.c.l.b16 %v443
        %v614 = vunpack.c.h.b16 %v443
        %v615 = vunpack.c.l.b16 %v444
        %v616 = vunpack.c.l.b16 %v445
        %v617 = vunpack.c.h.b16 %v445
        %v618 = vunpack.c.l.b16 %v446
        %v619 = vunpack.c.l.b16 %v447
        %v620 = vunpack.c.h.b16 %v447
        %v621 = vunpack.c.l.b16 %v448
        %v622 = vunpack.c.l.b16 %v449
        %v623 = vunpack.c.h.b16 %v449
        %v624 = vunpack.c.l.b16 %v450
        %v625 = vunpack.c.l.b16 %v451
        %v626 = vunpack.c.h.b16 %v451
        %v627 = vunpack.c.l.b16 %v452
        %v628 = vunpack.c.l.b16 %v453
        %v629 = vunpack.c.h.b16 %v453
        %v630 = vunpack.c.l.b16 %v454
        %v631 = vunpack.c.l.b16 %v455
        %v632 = vunpack.c.h.b16 %v455
        %v633 = vunpack.c.l.b16 %v456
        %v634 = vpack.c.b16 %v589, %v586
        %v635 = vpack.c.b16 %v590, %v587
        %v636 = vpack.c.b16 %v591, %v588
        %v637 = vpack.c.b16 %v595, %v592
        %v638 = vpack.c.b16 %v596, %v593
        %v639 = vpack.c.b16 %v597, %v594
        %v640 = vpack.c.b16 %v601, %v598
        %v641 = vpack.c.b16 %v602, %v599
        %v642 = vpack.c.b16 %v603, %v600
        %v643 = vpack.c.b16 %v607, %v604
        %v644 = vpack.c.b16 %v608, %v605
        %v645 = vpack.c.b16 %v609, %v606
        %v646 = vpack.c.b16 %v613, %v610
        %v647 = vpack.c.b16 %v614, %v611
        %v648 = vpack.c.b16 %v615, %v612
        %v649 = vpack.c.b16 %v619, %v616
        %v650 = vpack.c.b16 %v620, %v617
        %v651 = vpack.c.b16 %v621, %v618
        %v652 = vpack.c.b16 %v625, %v622
        %v653 = vpack.c.b16 %v626, %v623
        %v654 = vpack.c.b16 %v627, %v624
        %v655 = vpack.c.b16 %v631, %v628
        %v656 = vpack.c.b16 %v632, %v629
        %v657 = vpack.c.b16 %v633, %v630
        %682 = vmatprep.subr.bf16.mxu0 %v635
        %683 = vmatpush1.bf16.msra.mxu0 %v634
        %684 = vmatprep.subr.bf16.mxu0 %v638
        %685 = vmatpush1.bf16.msra.mxu0 %v637
        %686 = vmatprep.subr.bf16.mxu0 %v641
        %687 = vmatpush1.bf16.msra.mxu0 %v640
        %688 = vmatprep.subr.bf16.mxu0 %v644
        %689 = vmatpush1.bf16.msra.mxu0 %v643
        %690 = vmatprep.subr.bf16.mxu0 %v647
        %691 = vmatpush1.bf16.msra.mxu0 %v646
        %692 = vmatprep.subr.bf16.mxu0 %v650
        %693 = vmatpush1.bf16.msra.mxu0 %v649
        %694 = vmatprep.subr.bf16.mxu0 %v653
        %695 = vmatpush1.bf16.msra.mxu0 %v652
        %696 = vmatprep.subr.bf16.mxu0 %v656
        %697 = vmatpush1.bf16.msra.mxu0 %v655
        %698 = vmatprep.subr.bf16.mxu0 0
        %699 = vmatpush1.bf16.msra.mxu0 0
        %700 = vmatprep.subr.bf16.mxu0 0
        %701 = vmatpush1.bf16.msra.mxu0 0
        %702 = vmatprep.subr.bf16.mxu0 0
        %703 = vmatpush1.bf16.msra.mxu0 0
        %704 = vmatprep.subr.bf16.mxu0 0
        %705 = vmatpush1.bf16.msra.mxu0 0
        %706 = vmatprep.subr.bf16.mxu0 0
        %707 = vmatpush1.bf16.msra.mxu0 0
        %708 = vmatprep.subr.bf16.mxu0 0
        %709 = vmatpush1.bf16.msra.mxu0 0
        %710 = vmatprep.subr.bf16.mxu0 0
        %711 = vmatpush1.bf16.msra.mxu0 0
        %712 = vmatprep.subr.bf16.mxu0 0
        %713 = vmatpush1.bf16.msra.mxu0 0
        %714 = vmatprep.mubr.bf16.mxu0 0
        %715 = vmatmul.mubr.bf16.gmra.mrb[0].mxu0 %v421
        %v716 = vpop.f32.mrb[0].mxu0
        %v717 = vadd.f32 %v542, %v716
        %v718 = vpop.f32.mrb[0].mxu0
        %v719 = vadd.f32 %v546, %v718
        %v720 = vpop.f32.mrb[0].mxu0
        %v721 = vpop.f32.mrb[0].mxu0
        %722 = vdwg.mxu0
        %723 = vmatprep.subr.bf16.mxu0 0
        %724 = vmatpush1.bf16.msra.mxu0 %v636
        %725 = vmatprep.subr.bf16.mxu0 0
        %726 = vmatpush1.bf16.msra.mxu0 %v639
        %727 = vmatprep.subr.bf16.mxu0 0
        %728 = vmatpush1.bf16.msra.mxu0 %v642
        %729 = vmatprep.subr.bf16.mxu0 0
        %730 = vmatpush1.bf16.msra.mxu0 %v645
        %731 = vmatprep.subr.bf16.mxu0 0
        %732 = vmatpush1.bf16.msra.mxu0 %v648
        %733 = vmatprep.subr.bf16.mxu0 0
        %734 = vmatpush1.bf16.msra.mxu0 %v651
        %735 = vmatprep.subr.bf16.mxu0 0
        %736 = vmatpush1.bf16.msra.mxu0 %v654
        %737 = vmatprep.subr.bf16.mxu0 0
        %738 = vmatpush1.bf16.msra.mxu0 %v657
        %739 = vmatprep.subr.bf16.mxu0 0
        %740 = vmatpush1.bf16.msra.mxu0 0
        %741 = vmatprep.subr.bf16.mxu0 0
        %742 = vmatpush1.bf16.msra.mxu0 0
        %743 = vmatprep.subr.bf16.mxu0 0
        %744 = vmatpush1.bf16.msra.mxu0 0
        %745 = vmatprep.subr.bf16.mxu0 0
        %746 = vmatpush1.bf16.msra.mxu0 0
        %747 = vmatprep.subr.bf16.mxu0 0
        %748 = vmatpush1.bf16.msra.mxu0 0
        %749 = vmatprep.subr.bf16.mxu0 0
        %750 = vmatpush1.bf16.msra.mxu0 0
        %751 = vmatprep.subr.bf16.mxu0 0
        %752 = vmatpush1.bf16.msra.mxu0 0
        %753 = vmatprep.subr.bf16.mxu0 0
        %754 = vmatpush1.bf16.msra.mxu0 0
        %755 = vmatprep.mubr.bf16.mxu0 0
        %756 = vmatmul.mubr.bf16.gmra.mrb[0].mxu0 %v421
        %v757 = vpop.f32.mrb[0].mxu0
        %v758 = vadd.f32 %v550, %v757
        %v759 = vpop.f32.mrb[0].mxu0
        %v760 = vpop.f32.mrb[0].mxu0
        %v761 = vpop.f32.mrb[0].mxu0
        %762 = vdwg.mxu0
        %v763 = vld [vmem:[%s408] sm:$0x1]
        %v765 = vlaneseq
        %v766 = vshrl.u32 %v765, 7
        %v767 = vsub.s32 0, %v766
        %v768 = vrot.slane %v763, %v767
        %v770 = vpack.c.bf16 %v717, %v717
        %v771 = vpack.c.bf16 %v719, %v719
        %v772 = vpack.c.bf16 %v758, %v758
        %vm773 = vcmask 261120
        %v775 = vsel %vm773, %v770, 0
        %v778 = vsel %vm773, %v771, 0
        %780 = vmatprep.subr.bf16.mxu0 0
        %781 = vmatpush1.bf16.xpose.msra.mxu0 %v778
        %782 = vmatprep.subr.bf16.mxu0 0
        %783 = vmatpush1.bf16.xpose.msra.mxu0 0
        %784 = vmatprep.subr.bf16.mxu0 0
        %785 = vmatpush1.bf16.xpose.msra.mxu0 0
        %786 = vmatprep.subr.bf16.mxu0 0
        %787 = vmatpush1.bf16.xpose.msra.mxu0 0
        %788 = vmatprep.subr.bf16.mxu0 0
        %789 = vmatpush1.bf16.xpose.msra.mxu0 0
        %790 = vmatprep.subr.bf16.mxu0 0
        %791 = vmatpush1.bf16.xpose.msra.mxu0 0
        %792 = vmatprep.subr.bf16.mxu0 0
        %793 = vmatpush1.bf16.xpose.msra.mxu0 0
        %794 = vmatprep.subr.bf16.mxu0 0
        %795 = vmatpush1.bf16.xpose.msra.mxu0 0
        %796 = vmatprep.subr.bf16.mxu0 0
        %797 = vmatpush1.bf16.xpose.msra.mxu0 0
        %798 = vmatprep.subr.bf16.mxu0 0
        %799 = vmatpush1.bf16.xpose.msra.mxu0 0
        %800 = vmatprep.subr.bf16.mxu0 0
        %801 = vmatpush1.bf16.xpose.msra.mxu0 0
        %802 = vmatprep.subr.bf16.mxu0 0
        %803 = vmatpush1.bf16.xpose.msra.mxu0 0
        %804 = vmatprep.subr.bf16.mxu0 0
        %805 = vmatpush1.bf16.xpose.msra.mxu0 0
        %806 = vmatprep.subr.bf16.mxu0 0
        %807 = vmatpush1.bf16.xpose.msra.mxu0 0
        %808 = vmatprep.subr.bf16.mxu0 0
        %809 = vmatpush1.bf16.xpose.msra.mxu0 0
        %810 = vmatprep.subr.bf16.mxu0 0
        %811 = vmatpush1.bf16.xpose.msra.mxu0 0
        %812 = vmatprep.mubr.bf16.mxu0 0
        %813 = vmatmul.mubr.bf16.gmra.mrb[0].mxu0 %v775
        %v814 = vpop.f32.mrb[0].mxu0
        %v815 = vadd.f32 0.0, %v814
        %v816 = vpop.f32.mrb[0].mxu0
        %v817 = vpop.f32.mrb[0].mxu0
        %v818 = vpop.f32.mrb[0].mxu0
        %819 = vdwg.mxu0
        %v820 = vmul.f32 %v815, 0.17677669
        %v821 = vadd.f32 %v820, %v768
        %vm822 = vcmask 64512
        %v823 = vsel %vm822, %v821, -inf
        %824 = vmax.xlane.f32.xlu0 %v823
        %v825 = vpop.xlane.xlu0 %824
        %v826 = vsub.f32 %v821, %v825
        %v827 = vmul.f32 %v826, 1.442695
        %v828 = vpow.pop %v827
        %v829 = vsel %vm822, %v828, 0.0
        %830 = vadd.xlane.f32.xlu0 %v829
        %v831 = vpop.xlane.xlu0 %830
        %v832 = vrcp.pop %v831
        %v833 = vmul.f32 %v828, %v832
        %v834 = vpack.c.bf16 %v833, %v833
        %v836 = vsel %vm822, %v834, 0
        %vm838 = vcmask 1043456
        %v840 = vsel %vm838, %v772, 0
        %842 = vmatprep.subr.bf16.mxu0 0
        %843 = vmatpush1.bf16.msra.mxu0 %v840
        %844 = vmatprep.subr.bf16.mxu0 0
        %845 = vmatpush1.bf16.msra.mxu0 0
        %846 = vmatprep.subr.bf16.mxu0 0
        %847 = vmatpush1.bf16.msra.mxu0 0
        %848 = vmatprep.subr.bf16.mxu0 0
        %849 = vmatpush1.bf16.msra.mxu0 0
        %850 = vmatprep.subr.bf16.mxu0 0
        %851 = vmatpush1.bf16.msra.mxu0 0
        %852 = vmatprep.subr.bf16.mxu0 0
        %853 = vmatpush1.bf16.msra.mxu0 0
        %854 = vmatprep.subr.bf16.mxu0 0
        %855 = vmatpush1.bf16.msra.mxu0 0
        %856 = vmatprep.subr.bf16.mxu0 0
        %857 = vmatpush1.bf16.msra.mxu0 0
        %858 = vmatprep.subr.bf16.mxu0 0
        %859 = vmatpush1.bf16.msra.mxu0 0
        %860 = vmatprep.subr.bf16.mxu0 0
        %861 = vmatpush1.bf16.msra.mxu0 0
        %862 = vmatprep.subr.bf16.mxu0 0
        %863 = vmatpush1.bf16.msra.mxu0 0
        %864 = vmatprep.subr.bf16.mxu0 0
        %865 = vmatpush1.bf16.msra.mxu0 0
        %866 = vmatprep.subr.bf16.mxu0 0
        %867 = vmatpush1.bf16.msra.mxu0 0
        %868 = vmatprep.subr.bf16.mxu0 0
        %869 = vmatpush1.bf16.msra.mxu0 0
        %870 = vmatprep.subr.bf16.mxu0 0
        %871 = vmatpush1.bf16.msra.mxu0 0
        %872 = vmatprep.subr.bf16.mxu0 0
        %873 = vmatpush1.bf16.msra.mxu0 0
        %874 = vmatprep.mubr.bf16.mxu0 0
        %875 = vmatmul.mubr.bf16.gmra.mrb[0].mxu0 %v836
        %v876 = vpop.f32.mrb[0].mxu0
        %v877 = vadd.f32 0.0, %v876
        %v878 = vpop.f32.mrb[0].mxu0
        %v879 = vpop.f32.mrb[0].mxu0
        %v880 = vpop.f32.mrb[0].mxu0
        %881 = vdwg.mxu0
        %883 = vrot.lane.b32.xlu0 %v770, 96
        %v884 = vpop.permute.xlu0 %883
        %886 = vrot.lane.b32.xlu0 %v771, 96
        %v887 = vpop.permute.xlu0 %886
        %v889 = vsel %vm773, %v884, 0
        %v892 = vsel %vm773, %v887, 0
        %894 = vmatprep.subr.bf16.mxu0 0
        %895 = vmatpush1.bf16.xpose.msra.mxu0 %v892
        %896 = vmatprep.subr.bf16.mxu0 0
        %897 = vmatpush1.bf16.xpose.msra.mxu0 0
        %898 = vmatprep.subr.bf16.mxu0 0
        %899 = vmatpush1.bf16.xpose.msra.mxu0 0
        %900 = vmatprep.subr.bf16.mxu0 0
        %901 = vmatpush1.bf16.xpose.msra.mxu0 0
        %902 = vmatprep.subr.bf16.mxu0 0
        %903 = vmatpush1.bf16.xpose.msra.mxu0 0
        %904 = vmatprep.subr.bf16.mxu0 0
        %905 = vmatpush1.bf16.xpose.msra.mxu0 0
        %906 = vmatprep.subr.bf16.mxu0 0
        %907 = vmatpush1.bf16.xpose.msra.mxu0 0
        %908 = vmatprep.subr.bf16.mxu0 0
        %909 = vmatpush1.bf16.xpose.msra.mxu0 0
        %910 = vmatprep.subr.bf16.mxu0 0
        %911 = vmatpush1.bf16.xpose.msra.mxu0 0
        %912 = vmatprep.subr.bf16.mxu0 0
        %913 = vmatpush1.bf16.xpose.msra.mxu0 0
        %914 = vmatprep.subr.bf16.mxu0 0
        %915 = vmatpush1.bf16.xpose.msra.mxu0 0
        %916 = vmatprep.subr.bf16.mxu0 0
        %917 = vmatpush1.bf16.xpose.msra.mxu0 0
        %918 = vmatprep.subr.bf16.mxu0 0
        %919 = vmatpush1.bf16.xpose.msra.mxu0 0
        %920 = vmatprep.subr.bf16.mxu0 0
        %921 = vmatpush1.bf16.xpose.msra.mxu0 0
        %922 = vmatprep.subr.bf16.mxu0 0
        %923 = vmatpush1.bf16.xpose.msra.mxu0 0
        %924 = vmatprep.subr.bf16.mxu0 0
        %925 = vmatpush1.bf16.xpose.msra.mxu0 0
        %926 = vmatprep.mubr.bf16.mxu0 0
        %927 = vmatmul.mubr.bf16.gmra.mrb[0].mxu0 %v889
        %v928 = vpop.f32.mrb[0].mxu0
        %v929 = vadd.f32 0.0, %v928
        %v930 = vpop.f32.mrb[0].mxu0
        %v931 = vpop.f32.mrb[0].mxu0
        %v932 = vpop.f32.mrb[0].mxu0
        %933 = vdwg.mxu0
        %v934 = vmul.f32 %v929, 0.17677669
        %v935 = vadd.f32 %v934, %v768
        %v936 = vsel %vm822, %v935, -inf
        %937 = vmax.xlane.f32.xlu0 %v936
        %v938 = vpop.xlane.xlu0 %937
        %v939 = vsub.f32 %v935, %v938
        %v940 = vmul.f32 %v939, 1.442695
        %v941 = vpow.pop %v940
        %v942 = vsel %vm822, %v941, 0.0
        %943 = vadd.xlane.f32.xlu0 %v942
        %v944 = vpop.xlane.xlu0 %943
        %v945 = vrcp.pop %v944
        %v946 = vmul.f32 %v941, %v945
        %v947 = vpack.c.bf16 %v946, %v946
        %949 = vrot.lane.b32.xlu0 %v772, 96
        %v950 = vpop.permute.xlu0 %949
        %v952 = vsel %vm822, %v947, 0
        %v955 = vsel %vm838, %v950, 0
        %957 = vmatprep.subr.bf16.mxu0 0
        %958 = vmatpush1.bf16.msra.mxu0 %v955
        %959 = vmatprep.subr.bf16.mxu0 0
        %960 = vmatpush1.bf16.msra.mxu0 0
        %961 = vmatprep.subr.bf16.mxu0 0
        %962 = vmatpush1.bf16.msra.mxu0 0
        %963 = vmatprep.subr.bf16.mxu0 0
        %964 = vmatpush1.bf16.msra.mxu0 0
        %965 = vmatprep.subr.bf16.mxu0 0
        %966 = vmatpush1.bf16.msra.mxu0 0
        %967 = vmatprep.subr.bf16.mxu0 0
        %968 = vmatpush1.bf16.msra.mxu0 0
        %969 = vmatprep.subr.bf16.mxu0 0
        %970 = vmatpush1.bf16.msra.mxu0 0
        %971 = vmatprep.subr.bf16.mxu0 0
        %972 = vmatpush1.bf16.msra.mxu0 0
        %973 = vmatprep.subr.bf16.mxu0 0
        %974 = vmatpush1.bf16.msra.mxu0 0
        %975 = vmatprep.subr.bf16.mxu0 0
        %976 = vmatpush1.bf16.msra.mxu0 0
        %977 = vmatprep.subr.bf16.mxu0 0
        %978 = vmatpush1.bf16.msra.mxu0 0
        %979 = vmatprep.subr.bf16.mxu0 0
        %980 = vmatpush1.bf16.msra.mxu0 0
        %981 = vmatprep.subr.bf16.mxu0 0
        %982 = vmatpush1.bf16.msra.mxu0 0
        %983 = vmatprep.subr.bf16.mxu0 0
        %984 = vmatpush1.bf16.msra.mxu0 0
        %985 = vmatprep.subr.bf16.mxu0 0
        %986 = vmatpush1.bf16.msra.mxu0 0
        %987 = vmatprep.subr.bf16.mxu0 0
        %988 = vmatpush1.bf16.msra.mxu0 0
        %989 = vmatprep.mubr.bf16.mxu0 0
        %990 = vmatmul.mubr.bf16.gmra.mrb[0].mxu0 %v952
        %v991 = vpop.f32.mrb[0].mxu0
        %v992 = vadd.f32 0.0, %v991
        %v993 = vpop.f32.mrb[0].mxu0
        %v994 = vpop.f32.mrb[0].mxu0
        %v995 = vpop.f32.mrb[0].mxu0
        %996 = vdwg.mxu0
        %997 = vrot.lane.b32.xlu0 %v770, 64
        %v998 = vpop.permute.xlu0 %997
        %999 = vrot.lane.b32.xlu0 %v771, 64
        %v1000 = vpop.permute.xlu0 %999
        %v1002 = vsel %vm773, %v998, 0
        %v1005 = vsel %vm773, %v1000, 0
        %1007 = vmatprep.subr.bf16.mxu0 0
        %1008 = vmatpush1.bf16.xpose.msra.mxu0 %v1005
        %1009 = vmatprep.subr.bf16.mxu0 0
        %1010 = vmatpush1.bf16.xpose.msra.mxu0 0
        %1011 = vmatprep.subr.bf16.mxu0 0
        %1012 = vmatpush1.bf16.xpose.msra.mxu0 0
        %1013 = vmatprep.subr.bf16.mxu0 0
        %1014 = vmatpush1.bf16.xpose.msra.mxu0 0
        %1015 = vmatprep.subr.bf16.mxu0 0
        %1016 = vmatpush1.bf16.xpose.msra.mxu0 0
        %1017 = vmatprep.subr.bf16.mxu0 0
        %1018 = vmatpush1.bf16.xpose.msra.mxu0 0
        %1019 = vmatprep.subr.bf16.mxu0 0
        %1020 = vmatpush1.bf16.xpose.msra.mxu0 0
        %1021 = vmatprep.subr.bf16.mxu0 0
        %1022 = vmatpush1.bf16.xpose.msra.mxu0 0
        %1023 = vmatprep.subr.bf16.mxu0 0
        %1024 = vmatpush1.bf16.xpose.msra.mxu0 0
        %1025 = vmatprep.subr.bf16.mxu0 0
        %1026 = vmatpush1.bf16.xpose.msra.mxu0 0
        %1027 = vmatprep.subr.bf16.mxu0 0
        %1028 = vmatpush1.bf16.xpose.msra.mxu0 0
        %1029 = vmatprep.subr.bf16.mxu0 0
        %1030 = vmatpush1.bf16.xpose.msra.mxu0 0
        %1031 = vmatprep.subr.bf16.mxu0 0
        %1032 = vmatpush1.bf16.xpose.msra.mxu0 0
        %1033 = vmatprep.subr.bf16.mxu0 0
        %1034 = vmatpush1.bf16.xpose.msra.mxu0 0
        %1035 = vmatprep.subr.bf16.mxu0 0
        %1036 = vmatpush1.bf16.xpose.msra.mxu0 0
        %1037 = vmatprep.subr.bf16.mxu0 0
        %1038 = vmatpush1.bf16.xpose.msra.mxu0 0
        %1039 = vmatprep.mubr.bf16.mxu0 0
        %1040 = vmatmul.mubr.bf16.gmra.mrb[0].mxu0 %v1002
        %v1041 = vpop.f32.mrb[0].mxu0
        %v1042 = vadd.f32 0.0, %v1041
        %v1043 = vpop.f32.mrb[0].mxu0
        %v1044 = vpop.f32.mrb[0].mxu0
        %v1045 = vpop.f32.mrb[0].mxu0
        %1046 = vdwg.mxu0
        %v1047 = vmul.f32 %v1042, 0.17677669
        %v1048 = vadd.f32 %v1047, %v768
        %v1049 = vsel %vm822, %v1048, -inf
        %1050 = vmax.xlane.f32.xlu0 %v1049
        %v1051 = vpop.xlane.xlu0 %1050
        %v1052 = vsub.f32 %v1048, %v1051
        %v1053 = vmul.f32 %v1052, 1.442695
        %v1054 = vpow.pop %v1053
        %v1055 = vsel %vm822, %v1054, 0.0
        %1056 = vadd.xlane.f32.xlu0 %v1055
        %v1057 = vpop.xlane.xlu0 %1056
        %v1058 = vrcp.pop %v1057
        %v1059 = vmul.f32 %v1054, %v1058
        %v1060 = vpack.c.bf16 %v1059, %v1059
        %1061 = vrot.lane.b32.xlu0 %v772, 64
        %v1062 = vpop.permute.xlu0 %1061
        %v1064 = vsel %vm822, %v1060, 0
        %v1067 = vsel %vm838, %v1062, 0
        %1069 = vmatprep.subr.bf16.mxu0 0
        %1070 = vmatpush1.bf16.msra.mxu0 %v1067
        %1071 = vmatprep.subr.bf16.mxu0 0
        %1072 = vmatpush1.bf16.msra.mxu0 0
        %1073 = vmatprep.subr.bf16.mxu0 0
        %1074 = vmatpush1.bf16.msra.mxu0 0
        %1075 = vmatprep.subr.bf16.mxu0 0
        %1076 = vmatpush1.bf16.msra.mxu0 0
        %1077 = vmatprep.subr.bf16.mxu0 0
        %1078 = vmatpush1.bf16.msra.mxu0 0
        %1079 = vmatprep.subr.bf16.mxu0 0
        %1080 = vmatpush1.bf16.msra.mxu0 0
        %1081 = vmatprep.subr.bf16.mxu0 0
        %1082 = vmatpush1.bf16.msra.mxu0 0
        %1083 = vmatprep.subr.bf16.mxu0 0
        %1084 = vmatpush1.bf16.msra.mxu0 0
        %1085 = vmatprep.subr.bf16.mxu0 0
        %1086 = vmatpush1.bf16.msra.mxu0 0
        %1087 = vmatprep.subr.bf16.mxu0 0
        %1088 = vmatpush1.bf16.msra.mxu0 0
        %1089 = vmatprep.subr.bf16.mxu0 0
        %1090 = vmatpush1.bf16.msra.mxu0 0
        %1091 = vmatprep.subr.bf16.mxu0 0
        %1092 = vmatpush1.bf16.msra.mxu0 0
        %1093 = vmatprep.subr.bf16.mxu0 0
        %1094 = vmatpush1.bf16.msra.mxu0 0
        %1095 = vmatprep.subr.bf16.mxu0 0
        %1096 = vmatpush1.bf16.msra.mxu0 0
        %1097 = vmatprep.subr.bf16.mxu0 0
        %1098 = vmatpush1.bf16.msra.mxu0 0
        %1099 = vmatprep.subr.bf16.mxu0 0
        %1100 = vmatpush1.bf16.msra.mxu0 0
        %1101 = vmatprep.mubr.bf16.mxu0 0
        %1102 = vmatmul.mubr.bf16.gmra.mrb[0].mxu0 %v1064
        %v1103 = vpop.f32.mrb[0].mxu0
        %v1104 = vadd.f32 0.0, %v1103
        %v1105 = vpop.f32.mrb[0].mxu0
        %v1106 = vpop.f32.mrb[0].mxu0
        %v1107 = vpop.f32.mrb[0].mxu0
        %1108 = vdwg.mxu0
        %1109 = vrot.lane.b32.xlu0 %v770, 32
        %v1110 = vpop.permute.xlu0 %1109
        %1111 = vrot.lane.b32.xlu0 %v771, 32
        %v1112 = vpop.permute.xlu0 %1111
        %v1114 = vsel %vm773, %v1110, 0
        %v1117 = vsel %vm773, %v1112, 0
        %1119 = vmatprep.subr.bf16.mxu0 0
        %1120 = vmatpush1.bf16.xpose.msra.mxu0 %v1117
        %1121 = vmatprep.subr.bf16.mxu0 0
        %1122 = vmatpush1.bf16.xpose.msra.mxu0 0
        %1123 = vmatprep.subr.bf16.mxu0 0
        %1124 = vmatpush1.bf16.xpose.msra.mxu0 0
        %1125 = vmatprep.subr.bf16.mxu0 0
        %1126 = vmatpush1.bf16.xpose.msra.mxu0 0
        %1127 = vmatprep.subr.bf16.mxu0 0
        %1128 = vmatpush1.bf16.xpose.msra.mxu0 0
        %1129 = vmatprep.subr.bf16.mxu0 0
        %1130 = vmatpush1.bf16.xpose.msra.mxu0 0
        %1131 = vmatprep.subr.bf16.mxu0 0
        %1132 = vmatpush1.bf16.xpose.msra.mxu0 0
        %1133 = vmatprep.subr.bf16.mxu0 0
        %1134 = vmatpush1.bf16.xpose.msra.mxu0 0
        %1135 = vmatprep.subr.bf16.mxu0 0
        %1136 = vmatpush1.bf16.xpose.msra.mxu0 0
        %1137 = vmatprep.subr.bf16.mxu0 0
        %1138 = vmatpush1.bf16.xpose.msra.mxu0 0
        %1139 = vmatprep.subr.bf16.mxu0 0
        %1140 = vmatpush1.bf16.xpose.msra.mxu0 0
        %1141 = vmatprep.subr.bf16.mxu0 0
        %1142 = vmatpush1.bf16.xpose.msra.mxu0 0
        %1143 = vmatprep.subr.bf16.mxu0 0
        %1144 = vmatpush1.bf16.xpose.msra.mxu0 0
        %1145 = vmatprep.subr.bf16.mxu0 0
        %1146 = vmatpush1.bf16.xpose.msra.mxu0 0
        %1147 = vmatprep.subr.bf16.mxu0 0
        %1148 = vmatpush1.bf16.xpose.msra.mxu0 0
        %1149 = vmatprep.subr.bf16.mxu0 0
        %1150 = vmatpush1.bf16.xpose.msra.mxu0 0
        %1151 = vmatprep.mubr.bf16.mxu0 0
        %1152 = vmatmul.mubr.bf16.gmra.mrb[0].mxu0 %v1114
        %v1153 = vpop.f32.mrb[0].mxu0
        %v1154 = vadd.f32 0.0, %v1153
        %v1155 = vpop.f32.mrb[0].mxu0
        %v1156 = vpop.f32.mrb[0].mxu0
        %v1157 = vpop.f32.mrb[0].mxu0
        %1158 = vdwg.mxu0
        %v1159 = vmul.f32 %v1154, 0.17677669
        %v1160 = vadd.f32 %v1159, %v768
        %v1161 = vsel %vm822, %v1160, -inf
        %1162 = vmax.xlane.f32.xlu0 %v1161
        %v1163 = vpop.xlane.xlu0 %1162
        %v1164 = vsub.f32 %v1160, %v1163
        %v1165 = vmul.f32 %v1164, 1.442695
        %v1166 = vpow.pop %v1165
        %v1167 = vsel %vm822, %v1166, 0.0
        %1168 = vadd.xlane.f32.xlu0 %v1167
        %v1169 = vpop.xlane.xlu0 %1168
        %v1170 = vrcp.pop %v1169
        %v1171 = vmul.f32 %v1166, %v1170
        %v1172 = vpack.c.bf16 %v1171, %v1171
        %1173 = vrot.lane.b32.xlu0 %v772, 32
        %v1174 = vpop.permute.xlu0 %1173
        %v1176 = vsel %vm822, %v1172, 0
        %v1179 = vsel %vm838, %v1174, 0
        %1181 = vmatprep.subr.bf16.mxu0 0
        %1182 = vmatpush1.bf16.msra.mxu0 %v1179
        %1183 = vmatprep.subr.bf16.mxu0 0
        %1184 = vmatpush1.bf16.msra.mxu0 0
        %1185 = vmatprep.subr.bf16.mxu0 0
        %1186 = vmatpush1.bf16.msra.mxu0 0
        %1187 = vmatprep.subr.bf16.mxu0 0
        %1188 = vmatpush1.bf16.msra.mxu0 0
        %1189 = vmatprep.subr.bf16.mxu0 0
        %1190 = vmatpush1.bf16.msra.mxu0 0
        %1191 = vmatprep.subr.bf16.mxu0 0
        %1192 = vmatpush1.bf16.msra.mxu0 0
        %1193 = vmatprep.subr.bf16.mxu0 0
        %1194 = vmatpush1.bf16.msra.mxu0 0
        %1195 = vmatprep.subr.bf16.mxu0 0
        %1196 = vmatpush1.bf16.msra.mxu0 0
        %1197 = vmatprep.subr.bf16.mxu0 0
        %1198 = vmatpush1.bf16.msra.mxu0 0
        %1199 = vmatprep.subr.bf16.mxu0 0
        %1200 = vmatpush1.bf16.msra.mxu0 0
        %1201 = vmatprep.subr.bf16.mxu0 0
        %1202 = vmatpush1.bf16.msra.mxu0 0
        %1203 = vmatprep.subr.bf16.mxu0 0
        %1204 = vmatpush1.bf16.msra.mxu0 0
        %1205 = vmatprep.subr.bf16.mxu0 0
        %1206 = vmatpush1.bf16.msra.mxu0 0
        %1207 = vmatprep.subr.bf16.mxu0 0
        %1208 = vmatpush1.bf16.msra.mxu0 0
        %1209 = vmatprep.subr.bf16.mxu0 0
        %1210 = vmatpush1.bf16.msra.mxu0 0
        %1211 = vmatprep.subr.bf16.mxu0 0
        %1212 = vmatpush1.bf16.msra.mxu0 0
        %1213 = vmatprep.mubr.bf16.mxu0 0
        %1214 = vmatmul.mubr.bf16.gmra.mrb[0].mxu0 %v1176
        %v1215 = vpop.f32.mrb[0].mxu0
        %v1216 = vadd.f32 0.0, %v1215
        %v1217 = vpop.f32.mrb[0].mxu0
        %v1218 = vpop.f32.mrb[0].mxu0
        %v1219 = vpop.f32.mrb[0].mxu0
        %1220 = vdwg.mxu0
        %1222 = vrot.lane.b32.xlu0 %v992, 32
        %v1223 = vpop.permute.xlu0 %1222
        %1226 = vrot.lane.b32.xlu0 %v1104, 64
        %v1227 = vpop.permute.xlu0 %1226
        %1230 = vrot.lane.b32.xlu0 %v1216, 96
        %v1231 = vpop.permute.xlu0 %1230
        %v1233 = vsel %vm773, %v877, %v1223
        %vm1234 = vcmask 523264
        %v1235 = vsel %vm1234, %v1233, %v1227
        %vm1236 = vcmask 785408
        %v1237 = vsel %vm1236, %v1235, %v1231
        %v1238 = vpack.c.bf16 %v1237, %v1237
        %v1239 = vlaneseq
        %v1240 = vshrl.u32 %v1239, 7
        %v1241 = vsub.s32 0, %v1240
        %v1242 = vrot.slane %v537, %v1241
        %v1259 = vunpack.c.l.b16 %v463
        %v1260 = vunpack.c.l.b16 %v464
        %v1261 = vunpack.c.l.b16 %v465
        %v1262 = vunpack.c.l.b16 %v466
        %v1263 = vunpack.c.l.b16 %v467
        %v1264 = vunpack.c.l.b16 %v468
        %v1265 = vunpack.c.l.b16 %v469
        %v1266 = vunpack.c.l.b16 %v470
        %v1267 = vunpack.c.l.b16 %v471
        %v1268 = vunpack.c.l.b16 %v472
        %v1269 = vunpack.c.l.b16 %v473
        %v1270 = vunpack.c.l.b16 %v474
        %v1271 = vunpack.c.l.b16 %v475
        %v1272 = vunpack.c.l.b16 %v476
        %v1273 = vunpack.c.l.b16 %v477
        %v1274 = vunpack.c.l.b16 %v478
        %v1275 = vpack.c.b16 %v1260, %v1259
        %v1276 = vpack.c.b16 %v1262, %v1261
        %v1277 = vpack.c.b16 %v1264, %v1263
        %v1278 = vpack.c.b16 %v1266, %v1265
        %v1279 = vpack.c.b16 %v1268, %v1267
        %v1280 = vpack.c.b16 %v1270, %v1269
        %v1281 = vpack.c.b16 %v1272, %v1271
        %v1282 = vpack.c.b16 %v1274, %v1273
        %1291 = vmatprep.subr.bf16.mxu0 0
        %1292 = vmatpush1.bf16.msra.mxu0 %v1275
        %1293 = vmatprep.subr.bf16.mxu0 0
        %1294 = vmatpush1.bf16.msra.mxu0 %v1276
        %1295 = vmatprep.subr.bf16.mxu0 0
        %1296 = vmatpush1.bf16.msra.mxu0 %v1277
        %1297 = vmatprep.subr.bf16.mxu0 0
        %1298 = vmatpush1.bf16.msra.mxu0 %v1278
        %1299 = vmatprep.subr.bf16.mxu0 0
        %1300 = vmatpush1.bf16.msra.mxu0 %v1279
        %1301 = vmatprep.subr.bf16.mxu0 0
        %1302 = vmatpush1.bf16.msra.mxu0 %v1280
        %1303 = vmatprep.subr.bf16.mxu0 0
        %1304 = vmatpush1.bf16.msra.mxu0 %v1281
        %1305 = vmatprep.subr.bf16.mxu0 0
        %1306 = vmatpush1.bf16.msra.mxu0 %v1282
        %1307 = vmatprep.subr.bf16.mxu0 0
        %1308 = vmatpush1.bf16.msra.mxu0 0
        %1309 = vmatprep.subr.bf16.mxu0 0
        %1310 = vmatpush1.bf16.msra.mxu0 0
        %1311 = vmatprep.subr.bf16.mxu0 0
        %1312 = vmatpush1.bf16.msra.mxu0 0
        %1313 = vmatprep.subr.bf16.mxu0 0
        %1314 = vmatpush1.bf16.msra.mxu0 0
        %1315 = vmatprep.subr.bf16.mxu0 0
        %1316 = vmatpush1.bf16.msra.mxu0 0
        %1317 = vmatprep.subr.bf16.mxu0 0
        %1318 = vmatpush1.bf16.msra.mxu0 0
        %1319 = vmatprep.subr.bf16.mxu0 0
        %1320 = vmatpush1.bf16.msra.mxu0 0
        %1321 = vmatprep.subr.bf16.mxu0 0
        %1322 = vmatpush1.bf16.msra.mxu0 0
        %1323 = vmatprep.mubr.bf16.mxu0 0
        %1324 = vmatmul.mubr.bf16.gmra.mrb[0].mxu0 %v1238
        %v1325 = vpop.f32.mrb[0].mxu0
        %v1326 = vadd.f32 %v1242, %v1325
        %v1327 = vpop.f32.mrb[0].mxu0
        %v1328 = vpop.f32.mrb[0].mxu0
        %v1329 = vpop.f32.mrb[0].mxu0
        %1330 = vdwg.mxu0
        %v1331 = vadd.f32 %v1326, %v420
        %1332 = vadd.xlane.f32.xlu0 %v1331
        %v1333 = vpop.xlane.xlu0 %1332
        %v1334 = vrcp.pop 128.0
        %v1335 = vmul.f32 %v1333, %v1334
        %v1336 = vsub.f32 %v1331, %v1335
        %v1337 = vmul.f32 %v1336, %v1336
        %1338 = vadd.xlane.f32.xlu0 %v1337
        %v1339 = vpop.xlane.xlu0 %1338
        %v1340 = vmul.f32 %v1339, %v1334
        %v1341 = vadd.f32 %v1340, 1e-05
        %v1342 = vrsqrt.pop %v1341
        %v1343 = vmul.f32 %v1336, %v1342
        %v1344 = vlaneseq
        %v1345 = vshrl.u32 %v1344, 7
        %v1346 = vsub.s32 1, %v1345
        %v1347 = vrot.slane %v537, %v1346
        %v1348 = vmul.f32 %v1343, %v1347
        %v1349 = vlaneseq
        %v1350 = vshrl.u32 %v1349, 7
        %v1351 = vsub.s32 2, %v1350
        %v1352 = vrot.slane %v537, %v1351
        %v1353 = vadd.f32 %v1348, %v1352
        %v1354 = vpack.c.bf16 %v1353, %v1353
        %v1356 = vlaneseq
        %v1357 = vshrl.u32 %v1356, 7
        %v1358 = vsub.s32 0, %v1357
        %v1359 = vrot.slane %v500, %v1358
        %v1360 = vlaneseq
        %v1361 = vshrl.u32 %v1360, 7
        %v1362 = vsub.s32 1, %v1361
        %v1363 = vrot.slane %v500, %v1362
        %v1382 = vunpack.c.l.b16 %v482
        %v1383 = vunpack.c.h.b16 %v482
        %v1384 = vunpack.c.l.b16 %v483
        %v1385 = vunpack.c.h.b16 %v483
        %v1386 = vunpack.c.l.b16 %v484
        %v1387 = vunpack.c.h.b16 %v484
        %v1388 = vunpack.c.l.b16 %v485
        %v1389 = vunpack.c.h.b16 %v485
        %v1390 = vunpack.c.l.b16 %v486
        %v1391 = vunpack.c.h.b16 %v486
        %v1392 = vunpack.c.l.b16 %v487
        %v1393 = vunpack.c.h.b16 %v487
        %v1394 = vunpack.c.l.b16 %v488
        %v1395 = vunpack.c.h.b16 %v488
        %v1396 = vunpack.c.l.b16 %v489
        %v1397 = vunpack.c.h.b16 %v489
        %v1398 = vunpack.c.l.b16 %v490
        %v1399 = vunpack.c.h.b16 %v490
        %v1400 = vunpack.c.l.b16 %v491
        %v1401 = vunpack.c.h.b16 %v491
        %v1402 = vunpack.c.l.b16 %v492
        %v1403 = vunpack.c.h.b16 %v492
        %v1404 = vunpack.c.l.b16 %v493
        %v1405 = vunpack.c.h.b16 %v493
        %v1406 = vunpack.c.l.b16 %v494
        %v1407 = vunpack.c.h.b16 %v494
        %v1408 = vunpack.c.l.b16 %v495
        %v1409 = vunpack.c.h.b16 %v495
        %v1410 = vunpack.c.l.b16 %v496
        %v1411 = vunpack.c.h.b16 %v496
        %v1412 = vunpack.c.l.b16 %v497
        %v1413 = vunpack.c.h.b16 %v497
        %v1414 = vpack.c.b16 %v1384, %v1382
        %v1415 = vpack.c.b16 %v1385, %v1383
        %v1416 = vpack.c.b16 %v1388, %v1386
        %v1417 = vpack.c.b16 %v1389, %v1387
        %v1418 = vpack.c.b16 %v1392, %v1390
        %v1419 = vpack.c.b16 %v1393, %v1391
        %v1420 = vpack.c.b16 %v1396, %v1394
        %v1421 = vpack.c.b16 %v1397, %v1395
        %v1422 = vpack.c.b16 %v1400, %v1398
        %v1423 = vpack.c.b16 %v1401, %v1399
        %v1424 = vpack.c.b16 %v1404, %v1402
        %v1425 = vpack.c.b16 %v1405, %v1403
        %v1426 = vpack.c.b16 %v1408, %v1406
        %v1427 = vpack.c.b16 %v1409, %v1407
        %v1428 = vpack.c.b16 %v1412, %v1410
        %v1429 = vpack.c.b16 %v1413, %v1411
        %1446 = vmatprep.subr.bf16.mxu0 %v1415
        %1447 = vmatpush1.bf16.msra.mxu0 %v1414
        %1448 = vmatprep.subr.bf16.mxu0 %v1417
        %1449 = vmatpush1.bf16.msra.mxu0 %v1416
        %1450 = vmatprep.subr.bf16.mxu0 %v1419
        %1451 = vmatpush1.bf16.msra.mxu0 %v1418
        %1452 = vmatprep.subr.bf16.mxu0 %v1421
        %1453 = vmatpush1.bf16.msra.mxu0 %v1420
        %1454 = vmatprep.subr.bf16.mxu0 %v1423
        %1455 = vmatpush1.bf16.msra.mxu0 %v1422
        %1456 = vmatprep.subr.bf16.mxu0 %v1425
        %1457 = vmatpush1.bf16.msra.mxu0 %v1424
        %1458 = vmatprep.subr.bf16.mxu0 %v1427
        %1459 = vmatpush1.bf16.msra.mxu0 %v1426
        %1460 = vmatprep.subr.bf16.mxu0 %v1429
        %1461 = vmatpush1.bf16.msra.mxu0 %v1428
        %1462 = vmatprep.subr.bf16.mxu0 0
        %1463 = vmatpush1.bf16.msra.mxu0 0
        %1464 = vmatprep.subr.bf16.mxu0 0
        %1465 = vmatpush1.bf16.msra.mxu0 0
        %1466 = vmatprep.subr.bf16.mxu0 0
        %1467 = vmatpush1.bf16.msra.mxu0 0
        %1468 = vmatprep.subr.bf16.mxu0 0
        %1469 = vmatpush1.bf16.msra.mxu0 0
        %1470 = vmatprep.subr.bf16.mxu0 0
        %1471 = vmatpush1.bf16.msra.mxu0 0
        %1472 = vmatprep.subr.bf16.mxu0 0
        %1473 = vmatpush1.bf16.msra.mxu0 0
        %1474 = vmatprep.subr.bf16.mxu0 0
        %1475 = vmatpush1.bf16.msra.mxu0 0
        %1476 = vmatprep.subr.bf16.mxu0 0
        %1477 = vmatpush1.bf16.msra.mxu0 0
        %1478 = vmatprep.mubr.bf16.mxu0 0
        %1479 = vmatmul.mubr.bf16.gmra.mrb[0].mxu0 %v1354
        %v1480 = vpop.f32.mrb[0].mxu0
        %v1481 = vadd.f32 %v1359, %v1480
        %v1482 = vpop.f32.mrb[0].mxu0
        %v1483 = vadd.f32 %v1363, %v1482
        %v1484 = vpop.f32.mrb[0].mxu0
        %v1485 = vpop.f32.mrb[0].mxu0
        %1486 = vdwg.mxu0
        %v1487 = vmax.f32 %v1481, 0.0
        %v1488 = vmax.f32 %v1483, 0.0
        %v1489 = vpack.c.bf16 %v1487, %v1487
        %v1490 = vpack.c.bf16 %v1488, %v1488
        %v1491 = vlaneseq
        %v1492 = vshrl.u32 %v1491, 7
        %v1493 = vsub.s32 3, %v1492
        %v1494 = vrot.slane %v537, %v1493
        %v1527 = vunpack.c.l.b16 %v503
        %v1528 = vunpack.c.l.b16 %v504
        %v1529 = vunpack.c.l.b16 %v505
        %v1530 = vunpack.c.l.b16 %v506
        %v1531 = vunpack.c.l.b16 %v507
        %v1532 = vunpack.c.l.b16 %v508
        %v1533 = vunpack.c.l.b16 %v509
        %v1534 = vunpack.c.l.b16 %v510
        %v1535 = vunpack.c.l.b16 %v511
        %v1536 = vunpack.c.l.b16 %v512
        %v1537 = vunpack.c.l.b16 %v513
        %v1538 = vunpack.c.l.b16 %v514
        %v1539 = vunpack.c.l.b16 %v515
        %v1540 = vunpack.c.l.b16 %v516
        %v1541 = vunpack.c.l.b16 %v517
        %v1542 = vunpack.c.l.b16 %v518
        %v1543 = vunpack.c.l.b16 %v519
        %v1544 = vunpack.c.l.b16 %v520
        %v1545 = vunpack.c.l.b16 %v521
        %v1546 = vunpack.c.l.b16 %v522
        %v1547 = vunpack.c.l.b16 %v523
        %v1548 = vunpack.c.l.b16 %v524
        %v1549 = vunpack.c.l.b16 %v525
        %v1550 = vunpack.c.l.b16 %v526
        %v1551 = vunpack.c.l.b16 %v527
        %v1552 = vunpack.c.l.b16 %v528
        %v1553 = vunpack.c.l.b16 %v529
        %v1554 = vunpack.c.l.b16 %v530
        %v1555 = vunpack.c.l.b16 %v531
        %v1556 = vunpack.c.l.b16 %v532
        %v1557 = vunpack.c.l.b16 %v533
        %v1558 = vunpack.c.l.b16 %v534
        %v1559 = vpack.c.b16 %v1528, %v1527
        %v1560 = vpack.c.b16 %v1530, %v1529
        %v1561 = vpack.c.b16 %v1532, %v1531
        %v1562 = vpack.c.b16 %v1534, %v1533
        %v1563 = vpack.c.b16 %v1536, %v1535
        %v1564 = vpack.c.b16 %v1538, %v1537
        %v1565 = vpack.c.b16 %v1540, %v1539
        %v1566 = vpack.c.b16 %v1542, %v1541
        %v1567 = vpack.c.b16 %v1544, %v1543
        %v1568 = vpack.c.b16 %v1546, %v1545
        %v1569 = vpack.c.b16 %v1548, %v1547
        %v1570 = vpack.c.b16 %v1550, %v1549
        %v1571 = vpack.c.b16 %v1552, %v1551
        %v1572 = vpack.c.b16 %v1554, %v1553
        %v1573 = vpack.c.b16 %v1556, %v1555
        %v1574 = vpack.c.b16 %v1558, %v1557
        %1591 = vmatprep.subr.bf16.mxu0 0
        %1592 = vmatpush1.bf16.msra.mxu0 %v1559
        %1593 = vmatprep.subr.bf16.mxu0 0
        %1594 = vmatpush1.bf16.msra.mxu0 %v1560
        %1595 = vmatprep.subr.bf16.mxu0 0
        %1596 = vmatpush1.bf16.msra.mxu0 %v1561
        %1597 = vmatprep.subr.bf16.mxu0 0
        %1598 = vmatpush1.bf16.msra.mxu0 %v1562
        %1599 = vmatprep.subr.bf16.mxu0 0
        %1600 = vmatpush1.bf16.msra.mxu0 %v1563
        %1601 = vmatprep.subr.bf16.mxu0 0
        %1602 = vmatpush1.bf16.msra.mxu0 %v1564
        %1603 = vmatprep.subr.bf16.mxu0 0
        %1604 = vmatpush1.bf16.msra.mxu0 %v1565
        %1605 = vmatprep.subr.bf16.mxu0 0
        %1606 = vmatpush1.bf16.msra.mxu0 %v1566
        %1607 = vmatprep.subr.bf16.mxu0 0
        %1608 = vmatpush1.bf16.msra.mxu0 %v1567
        %1609 = vmatprep.subr.bf16.mxu0 0
        %1610 = vmatpush1.bf16.msra.mxu0 %v1568
        %1611 = vmatprep.subr.bf16.mxu0 0
        %1612 = vmatpush1.bf16.msra.mxu0 %v1569
        %1613 = vmatprep.subr.bf16.mxu0 0
        %1614 = vmatpush1.bf16.msra.mxu0 %v1570
        %1615 = vmatprep.subr.bf16.mxu0 0
        %1616 = vmatpush1.bf16.msra.mxu0 %v1571
        %1617 = vmatprep.subr.bf16.mxu0 0
        %1618 = vmatpush1.bf16.msra.mxu0 %v1572
        %1619 = vmatprep.subr.bf16.mxu0 0
        %1620 = vmatpush1.bf16.msra.mxu0 %v1573
        %1621 = vmatprep.subr.bf16.mxu0 0
        %1622 = vmatpush1.bf16.msra.mxu0 %v1574
        %1623 = vmatprep.mubr.bf16.mxu0 %v1490
        %1624 = vmatmul.mubr.bf16.gmra.mrb[0].mxu0 %v1489
        %v1625 = vpop.f32.mrb[0].mxu0
        %v1626 = vadd.f32 %v1494, %v1625
        %v1627 = vpop.f32.mrb[0].mxu0
        %v1628 = vpop.f32.mrb[0].mxu0
        %v1629 = vpop.f32.mrb[0].mxu0
        %1630 = vdwg.mxu0
        %v1631 = vadd.f32 %v1626, %v1353
        %1632 = vadd.xlane.f32.xlu0 %v1631
        %v1633 = vpop.xlane.xlu0 %1632
        %v1634 = vmul.f32 %v1633, %v1334
        %v1635 = vsub.f32 %v1631, %v1634
        %v1636 = vmul.f32 %v1635, %v1635
        %1637 = vadd.xlane.f32.xlu0 %v1636
        %v1638 = vpop.xlane.xlu0 %1637
        %v1639 = vmul.f32 %v1638, %v1334
        %v1640 = vadd.f32 %v1639, 1e-05
        %v1641 = vrsqrt.pop %v1640
        %v1642 = vmul.f32 %v1635, %v1641
        %v1643 = vlaneseq
        %v1644 = vshrl.u32 %v1643, 7
        %v1645 = vsub.s32 4, %v1644
        %v1646 = vrot.slane %v537, %v1645
        %v1647 = vmul.f32 %v1642, %v1646
        %v1648 = vlaneseq
        %v1649 = vshrl.u32 %v1648, 7
        %v1650 = vsub.s32 5, %v1649
        %v1651 = vrot.slane %v537, %v1650
        %v1652 = vadd.f32 %v1647, %v1651
        %1653 = vst [vmem:[%s405] sm:$0xff] %v1652
        %s1654 = sand.u32 %s245, 1
        %s1655 = scalar_lea.sflag [#allocation4], %s1654
        %s1656 = sand.u32 %s245, 1
        %s1657 = smul.addr %s1656, 8
        %s1658 = scalar_lea.vmem [#allocation10], %s1657
        // Predicated region
        $region77: #{_lambda_.1} parent=55 // pred_check
          %p1659 = pneg %p255
        $region78: #{_lambda_.1} parent=55 // pred_check_branch
          %1661 = sbr.rel (%p1659) target = $region80
        $region79: #{_lambda_.1} parent=55 // pred_region
          %s1663 = ssub.s32 128, 128
          %1664 = vsyncadd %s1655, %s1663
          %s1665 = smul.addr %s30, 128
          %s1666 = scalar_lea.hbm %s9, %s1665
          %s1668 = sshll.u32 %s1658, 4
          %s1669 = int_to_ptr.vmem [resolvable:$true] %s1668
          %1671 = dma.vmem_to_hbm [thread:$0]  %s1669, 128, %s1666, %s1655
        $region80: #{_lambda_.1} parent=55 // pred_fallthru
          _
      $region56: #{_lambda_.1} parent=5 // pred_fallthru
        _
      %p1672 = scmp.le.s32.totalorder 2, %s21
      // Predicated region
      $region81: #{_lambda_.1} parent=5 // pred_check
        %p1673 = pneg %p1672
      $region82: #{_lambda_.1} parent=5 // pred_check_branch
        %1675 = sbr.rel (%p1673) target = $region84
      $region83: #{_lambda_.1} parent=5 // pred_region
        %s1676 = ssub.s32 %s21, 2
        // Predicated region
        $region85: #{_lambda_.1} parent=83 // pred_check
          %p1677 = pneg %p261
        $region86: #{_lambda_.1} parent=83 // pred_check_branch
          %1679 = sbr.rel (%p1677) target = $region88
        $region87: #{_lambda_.1} parent=83 // pred_region
          %s1680 = sand.u32 %s246, 1
          %s1681 = scalar_lea.sflag [#allocation4], %s1680
          %s1682 = sand.u32 %s246, 1
          %s1683 = smul.addr %s1682, 8
          %s1684 = scalar_lea.vmem [#allocation10], %s1683
          %1685 = dma.done %s1681, 128
        $region88: #{_lambda_.1} parent=83 // pred_fallthru
          _
      $region84: #{_lambda_.1} parent=5 // pred_fallthru
        _
    $region6: #{_lambda_.1} parent=1 // loop_footer
      %s25 = sadd.s32 1, %s21
    $region7: #{_lambda_.1} parent=1 // loop_footer_branch
      %20 = sbr.rel target = $region3
    $region8: #{_lambda_.1} parent=1 // loop_exit
      _
    %1686 = vsyncpa [#allocation3], 1
    %s1687 = scalar_lea.sflag [#allocation3], 1
    %1688 = vsyncpa %s1687, 1
    %1689 = vsyncpa [#allocation6], 1
    %1690 = vsyncpa [#allocation9], 1
    %1691 = vsyncpa [#allocation4], 1
    %s1692 = scalar_lea.sflag [#allocation4], 1
    %1693 = vsyncpa %s1692, 1

</llo_original>
